<compile_context>
chip_gen: v7x
topology: tpu7x:2x2x1
jax: 0.10.0
libtpu: 0.0.40
codegen_flags: <defaults>
</compile_context>

<pallas_src>
import functools

import jax
import jax.numpy as jnp
from jax.experimental import pallas as pl
from jax.experimental.pallas import tpu as pltpu

_DIMS = (400, 300, 200, 1)   # hidden0/hidden1/hidden2/out widths
_TILE_B = 256                # batch tile (fills 256-wide MXU rows on v6e/v7x)


def _leaky_relu(x, slope=0.2):
    return jnp.where(x > 0, x, slope * x)


def _round_up(n, m):
    return (n + m - 1) // m * m


def _pad_to(x, rows, cols):
    """Zero-pad a 2-D array up to (rows, cols)."""
    r, c = x.shape
    return jnp.pad(x, ((0, rows - r), (0, cols - c)))


def _disc2_kernel(x_ref,
                  w0_ref, b0_ref,
                  w1_ref, b1_ref,
                  w2_ref, b2_ref,
                  w3_ref, b3_ref,
                  o_ref):
    """Fused 4-layer MLP for one batch tile.

    Weights are bf16 (VMEM-resident across grid steps); activations are cast
    to bf16 only at the dot, all elementwise math is f32.
    """
    h = x_ref[...]  # f32 (tile_b, 128)

    # hidden0: Linear + LeakyReLU(0.2)   (Dropout == identity in eval)
    h = jnp.dot(h.astype(jnp.bfloat16), w0_ref[...],
                preferred_element_type=jnp.float32) + b0_ref[...]
    h = _leaky_relu(h)

    # hidden1
    h = jnp.dot(h.astype(jnp.bfloat16), w1_ref[...],
                preferred_element_type=jnp.float32) + b1_ref[...]
    h = _leaky_relu(h)

    # hidden2
    h = jnp.dot(h.astype(jnp.bfloat16), w2_ref[...],
                preferred_element_type=jnp.float32) + b2_ref[...]
    h = _leaky_relu(h)

    # out: Linear + Sigmoid  (exp on EUP, approx reciprocal on EUP slot)
    z = jnp.dot(h.astype(jnp.bfloat16), w3_ref[...],
                preferred_element_type=jnp.float32) + b3_ref[...]
    o_ref[...] = pl.reciprocal(1.0 + jnp.exp(-z), approx=True)


def _padded_dims(n_features):
    dims = [n_features] + list(_DIMS)
    return [_round_up(d, 128) for d in dims]


def prepare_params(params, n_features):
    """Pad + cast parameters ONCE (call outside the jitted forward).

    Weights -> bf16, zero-padded to (128k_in, 128k_out).
    Biases  -> f32,  zero-padded to (1, 128k_out).
    Zero padding is semantics-preserving: LeakyReLU(0)=0, so padded columns
    carry zeros through every hidden layer; padded outputs are sliced away.
    """
    pdims = _padded_dims(n_features)
    prepped = []
    for i in range(4):
        w = _pad_to(params[f"w{i}"], pdims[i], pdims[i + 1]).astype(jnp.bfloat16)
        b = _pad_to(params[f"b{i}"].reshape(1, -1), 1, pdims[i + 1]).astype(jnp.float32)
        prepped.append(w)
        prepped.append(b)
    return tuple(prepped)


@functools.partial(jax.jit, static_argnames=("n_features",))
def discriminator2_forward(x, prepped, *, n_features):
    """x: (B, n_features) float32 -> (B, 1) float32 in (0, 1)."""
    B = x.shape[0]
    pdims = _padded_dims(n_features)

    # Batch tiling: full 256-row tiles when the caller batches (fills the MXU
    # rows); otherwise a single 8-row-aligned tile for tiny batches.
    if B >= _TILE_B:
        tile_b = _TILE_B
        Bp = _round_up(B, _TILE_B)
    else:
        tile_b = _round_up(B, 8)
        Bp = tile_b
    grid = (Bp // tile_b,)

    xp = _pad_to(x.astype(jnp.float32), Bp, pdims[0])

    # x / out are tiled along the batch; weights & biases use a constant
    # index_map so they stay VMEM-resident across grid steps.
    x_spec = pl.BlockSpec((tile_b, pdims[0]), lambda i: (i, 0))
    out_spec = pl.BlockSpec((tile_b, pdims[-1]), lambda i: (i, 0))
    param_specs = []
    for i in range(4):
        param_specs.append(pl.BlockSpec((pdims[i], pdims[i + 1]), lambda i: (0, 0)))
        param_specs.append(pl.BlockSpec((1, pdims[i + 1]), lambda i: (0, 0)))

    flops = 2 * Bp * sum(pdims[i] * pdims[i + 1] for i in range(4))
    bytes_accessed = (xp.size * 4
                      + sum(int(p.size) * p.dtype.itemsize for p in prepped)
                      + Bp * pdims[-1] * 4)
    transcendentals = Bp * pdims[-1]

    out_padded = pl.pallas_call(
        _disc2_kernel,
        grid=grid,
        out_shape=jax.ShapeDtypeStruct((Bp, pdims[-1]), jnp.float32),
        in_specs=[x_spec] + param_specs,
        out_specs=out_spec,
        compiler_params=pltpu.CompilerParams(
            dimension_semantics=("parallel",),   # shards across v7x's 2 TCs
            vmem_limit_bytes=16 << 20,           # ~1.5 MiB weights + tile bufs
        ),
        cost_estimate=pl.CostEstimate(
            flops=flops,
            transcendentals=transcendentals,
            bytes_accessed=bytes_accessed,
        ),
    )(xp, *prepped)

    return out_padded[:B, :1]


def init_params(key, n_features):
    """Deterministic init mimicking PyTorch nn.Linear default (U[-1/sqrt(fan_in), +])."""
    dims = [n_features] + list(_DIMS)
    params = {}
    for i in range(4):
        key, kw, kb = jax.random.split(key, 3)
        fan_in, fan_out = dims[i], dims[i + 1]
        bound = 1.0 / jnp.sqrt(jnp.float32(fan_in))
        # Stored as (in, out) so the kernel can do x @ W directly.
        params[f"w{i}"] = jax.random.uniform(
            kw, (fan_in, fan_out), jnp.float32, minval=-bound, maxval=bound)
        params[f"b{i}"] = jax.random.uniform(
            kb, (fan_out,), jnp.float32, minval=-bound, maxval=bound)
    return params


def reference_forward(x, params):
    """Pure-JAX f32 reference for correctness checking."""
    h = x
    for i in range(3):
        h = h @ params[f"w{i}"] + params[f"b{i}"]
        h = jnp.where(h > 0, h, 0.2 * h)
    z = h @ params["w3"] + params["b3"]
    return jax.nn.sigmoid(z)


def _check(batch, n_features, key):
    key, kx, kp = jax.random.split(key, 3)
    x = jax.random.normal(kx, (batch, n_features), jnp.float32)
    params = init_params(kp, n_features)
    prepped = prepare_params(params, n_features)

    out = discriminator2_forward(x, prepped, n_features=n_features)
    out = jax.block_until_ready(out)

    ref = reference_forward(x, params)
    assert out.shape == (batch, 1), out.shape
    # bf16 weights + approx reciprocal vs. f32 reference -> looser tolerance.
    assert jnp.allclose(out, ref, atol=2e-2, rtol=2e-2), (
        float(jnp.max(jnp.abs(out - ref))))
    return key


if __name__ == "__main__":
    B, N_FEATURES = 2, 32  # input_shape = (B, n_features)

    key = jax.random.PRNGKey(0)
    key = _check(B, N_FEATURES, key)      # tiny batch: single tile
    _check(512, N_FEATURES, key)          # batched path: grid of 256-row tiles

    print("KERNEL_OK")
</pallas_src>

<mosaic_0001>
module attributes {stable_mosaic.version = 11 : i64} {
  func.func @_disc2_kernel(%arg0: i32, %arg1: memref<8x128xf32, #tpu.memory_space<vmem>>, %arg2: memref<128x512xbf16, #tpu.memory_space<vmem>>, %arg3: memref<1x512xf32, #tpu.memory_space<vmem>>, %arg4: memref<512x384xbf16, #tpu.memory_space<vmem>>, %arg5: memref<1x384xf32, #tpu.memory_space<vmem>>, %arg6: memref<384x256xbf16, #tpu.memory_space<vmem>>, %arg7: memref<1x256xf32, #tpu.memory_space<vmem>>, %arg8: memref<256x128xbf16, #tpu.memory_space<vmem>>, %arg9: memref<1x128xf32, #tpu.memory_space<vmem>>, %arg10: memref<8x128xf32, #tpu.memory_space<vmem>>) attributes {dimension_semantics = [#tpu.dimension_semantics<parallel>], iteration_bounds = array<i64: 1>, scalar_prefetch = 0 : i64, scratch_operands = 0 : i64, tpu.core_type = #tpu.core_type<tc>, window_params = [{transform_indices = @transform_0, window_bounds = array<i64: 8, 128>}, {pipeline_mode = #tpu.pipeline_mode<synchronous>, transform_indices = @transform_1, window_bounds = array<i64: 128, 512>}, {pipeline_mode = #tpu.pipeline_mode<synchronous>, transform_indices = @transform_2, window_bounds = array<i64: 1, 512>}, {pipeline_mode = #tpu.pipeline_mode<synchronous>, transform_indices = @transform_3, window_bounds = array<i64: 512, 384>}, {pipeline_mode = #tpu.pipeline_mode<synchronous>, transform_indices = @transform_4, window_bounds = array<i64: 1, 384>}, {pipeline_mode = #tpu.pipeline_mode<synchronous>, transform_indices = @transform_5, window_bounds = array<i64: 384, 256>}, {pipeline_mode = #tpu.pipeline_mode<synchronous>, transform_indices = @transform_6, window_bounds = array<i64: 1, 256>}, {pipeline_mode = #tpu.pipeline_mode<synchronous>, transform_indices = @transform_7, window_bounds = array<i64: 256, 128>}, {pipeline_mode = #tpu.pipeline_mode<synchronous>, transform_indices = @transform_8, window_bounds = array<i64: 1, 128>}, {transform_indices = @transform_9, window_bounds = array<i64: 8, 128>}]} {
    %c0 = arith.constant 0 : index
    %c0_0 = arith.constant 0 : index
    %0 = vector.load %arg1[%c0, %c0_0] : memref<8x128xf32, #tpu.memory_space<vmem>>, vector<8x128xf32>
    %1 = arith.truncf %0 : vector<8x128xf32> to vector<8x128xbf16>
    %c0_1 = arith.constant 0 : index
    %c0_2 = arith.constant 0 : index
    %2 = vector.load %arg2[%c0_1, %c0_2] : memref<128x512xbf16, #tpu.memory_space<vmem>>, vector<128x512xbf16>
    %cst = arith.constant dense<0.000000e+00> : vector<8x512xf32>
    %3 = tpu.matmul %1, %2, %cst {dimension_numbers = #tpu.dot_dimension_numbers<[1], [0], [0], [1], [0, 0, 1, 1], [], []>} : vector<8x128xbf16>, vector<128x512xbf16>, vector<8x512xf32> -> vector<8x512xf32>
    %c0_3 = arith.constant 0 : index
    %c0_4 = arith.constant 0 : index
    %4 = vector.load %arg3[%c0_3, %c0_4] : memref<1x512xf32, #tpu.memory_space<vmem>>, vector<1x512xf32>
    %5 = vector.broadcast %4 : vector<1x512xf32> to vector<8x512xf32>
    %6 = arith.addf %3, %5 : vector<8x512xf32>
    %cst_5 = arith.constant 0.000000e+00 : f32
    %7 = vector.broadcast %cst_5 : f32 to vector<8x512xf32>
    %8 = arith.cmpf ogt, %6, %7 : vector<8x512xf32>
    %cst_6 = arith.constant 2.000000e-01 : f32
    %9 = vector.broadcast %cst_6 : f32 to vector<8x512xf32>
    %10 = arith.mulf %9, %6 : vector<8x512xf32>
    %11 = arith.select %8, %6, %10 : vector<8x512xi1>, vector<8x512xf32>
    %12 = arith.truncf %11 : vector<8x512xf32> to vector<8x512xbf16>
    %c0_7 = arith.constant 0 : index
    %c0_8 = arith.constant 0 : index
    %13 = vector.load %arg4[%c0_7, %c0_8] : memref<512x384xbf16, #tpu.memory_space<vmem>>, vector<512x384xbf16>
    %cst_9 = arith.constant dense<0.000000e+00> : vector<8x384xf32>
    %14 = tpu.matmul %12, %13, %cst_9 {dimension_numbers = #tpu.dot_dimension_numbers<[1], [0], [0], [1], [0, 0, 1, 1], [], []>} : vector<8x512xbf16>, vector<512x384xbf16>, vector<8x384xf32> -> vector<8x384xf32>
    %c0_10 = arith.constant 0 : index
    %c0_11 = arith.constant 0 : index
    %15 = vector.load %arg5[%c0_10, %c0_11] : memref<1x384xf32, #tpu.memory_space<vmem>>, vector<1x384xf32>
    %16 = vector.broadcast %15 : vector<1x384xf32> to vector<8x384xf32>
    %17 = arith.addf %14, %16 : vector<8x384xf32>
    %cst_12 = arith.constant 0.000000e+00 : f32
    %18 = vector.broadcast %cst_12 : f32 to vector<8x384xf32>
    %19 = arith.cmpf ogt, %17, %18 : vector<8x384xf32>
    %cst_13 = arith.constant 2.000000e-01 : f32
    %20 = vector.broadcast %cst_13 : f32 to vector<8x384xf32>
    %21 = arith.mulf %20, %17 : vector<8x384xf32>
    %22 = arith.select %19, %17, %21 : vector<8x384xi1>, vector<8x384xf32>
    %23 = arith.truncf %22 : vector<8x384xf32> to vector<8x384xbf16>
    %c0_14 = arith.constant 0 : index
    %c0_15 = arith.constant 0 : index
    %24 = vector.load %arg6[%c0_14, %c0_15] : memref<384x256xbf16, #tpu.memory_space<vmem>>, vector<384x256xbf16>
    %cst_16 = arith.constant dense<0.000000e+00> : vector<8x256xf32>
    %25 = tpu.matmul %23, %24, %cst_16 {dimension_numbers = #tpu.dot_dimension_numbers<[1], [0], [0], [1], [0, 0, 1, 1], [], []>} : vector<8x384xbf16>, vector<384x256xbf16>, vector<8x256xf32> -> vector<8x256xf32>
    %c0_17 = arith.constant 0 : index
    %c0_18 = arith.constant 0 : index
    %26 = vector.load %arg7[%c0_17, %c0_18] : memref<1x256xf32, #tpu.memory_space<vmem>>, vector<1x256xf32>
    %27 = vector.broadcast %26 : vector<1x256xf32> to vector<8x256xf32>
    %28 = arith.addf %25, %27 : vector<8x256xf32>
    %cst_19 = arith.constant 0.000000e+00 : f32
    %29 = vector.broadcast %cst_19 : f32 to vector<8x256xf32>
    %30 = arith.cmpf ogt, %28, %29 : vector<8x256xf32>
    %cst_20 = arith.constant 2.000000e-01 : f32
    %31 = vector.broadcast %cst_20 : f32 to vector<8x256xf32>
    %32 = arith.mulf %31, %28 : vector<8x256xf32>
    %33 = arith.select %30, %28, %32 : vector<8x256xi1>, vector<8x256xf32>
    %34 = arith.truncf %33 : vector<8x256xf32> to vector<8x256xbf16>
    %c0_21 = arith.constant 0 : index
    %c0_22 = arith.constant 0 : index
    %35 = vector.load %arg8[%c0_21, %c0_22] : memref<256x128xbf16, #tpu.memory_space<vmem>>, vector<256x128xbf16>
    %cst_23 = arith.constant dense<0.000000e+00> : vector<8x128xf32>
    %36 = tpu.matmul %34, %35, %cst_23 {dimension_numbers = #tpu.dot_dimension_numbers<[1], [0], [0], [1], [0, 0, 1, 1], [], []>} : vector<8x256xbf16>, vector<256x128xbf16>, vector<8x128xf32> -> vector<8x128xf32>
    %c0_24 = arith.constant 0 : index
    %c0_25 = arith.constant 0 : index
    %37 = vector.load %arg9[%c0_24, %c0_25] : memref<1x128xf32, #tpu.memory_space<vmem>>, vector<1x128xf32>
    %38 = vector.broadcast %37 : vector<1x128xf32> to vector<8x128xf32>
    %39 = arith.addf %36, %38 : vector<8x128xf32>
    %cst_26 = arith.constant 0.000000e+00 : f32
    %40 = vector.broadcast %cst_26 : f32 to vector<8x128xf32>
    %41 = arith.subf %40, %39 : vector<8x128xf32>
    %42 = math.exp %41 : vector<8x128xf32>
    %cst_27 = arith.constant 1.000000e+00 : f32
    %43 = vector.broadcast %cst_27 : f32 to vector<8x128xf32>
    %44 = arith.addf %43, %42 : vector<8x128xf32>
    %45 = tpu.reciprocal %44 {approx = true} : vector<8x128xf32> -> vector<8x128xf32>
    %c0_28 = arith.constant 0 : index
    %c0_29 = arith.constant 0 : index
    %46 = vector.load %arg10[%c0_28, %c0_29] : memref<8x128xf32, #tpu.memory_space<vmem>>, vector<8x128xf32>
    tpu.vector_store %arg10[%c0_28, %c0_29], %45 {strides = array<i32>} : memref<8x128xf32, #tpu.memory_space<vmem>>, vector<8x128xf32>,
    return
  }
  func.func @transform_0(%arg0: i32) -> (i32, i32) {
    %c0_i32 = arith.constant 0 : i32
    %c0_i32_0 = arith.constant 0 : i32
    return %arg0, %c0_i32 : i32, i32
  }
  func.func @transform_1(%arg0: i32) -> (i32, i32) {
    %c0_i32 = arith.constant 0 : i32
    %c0_i32_0 = arith.constant 0 : i32
    %c0_i32_1 = arith.constant 0 : i32
    return %c0_i32, %c0_i32_0 : i32, i32
  }
  func.func @transform_2(%arg0: i32) -> (i32, i32) {
    %c0_i32 = arith.constant 0 : i32
    %c0_i32_0 = arith.constant 0 : i32
    %c0_i32_1 = arith.constant 0 : i32
    return %c0_i32, %c0_i32_0 : i32, i32
  }
  func.func @transform_3(%arg0: i32) -> (i32, i32) {
    %c0_i32 = arith.constant 0 : i32
    %c0_i32_0 = arith.constant 0 : i32
    %c0_i32_1 = arith.constant 0 : i32
    return %c0_i32, %c0_i32_0 : i32, i32
  }
  func.func @transform_4(%arg0: i32) -> (i32, i32) {
    %c0_i32 = arith.constant 0 : i32
    %c0_i32_0 = arith.constant 0 : i32
    %c0_i32_1 = arith.constant 0 : i32
    return %c0_i32, %c0_i32_0 : i32, i32
  }
  func.func @transform_5(%arg0: i32) -> (i32, i32) {
    %c0_i32 = arith.constant 0 : i32
    %c0_i32_0 = arith.constant 0 : i32
    %c0_i32_1 = arith.constant 0 : i32
    return %c0_i32, %c0_i32_0 : i32, i32
  }
  func.func @transform_6(%arg0: i32) -> (i32, i32) {
    %c0_i32 = arith.constant 0 : i32
    %c0_i32_0 = arith.constant 0 : i32
    %c0_i32_1 = arith.constant 0 : i32
    return %c0_i32, %c0_i32_0 : i32, i32
  }
  func.func @transform_7(%arg0: i32) -> (i32, i32) {
    %c0_i32 = arith.constant 0 : i32
    %c0_i32_0 = arith.constant 0 : i32
    %c0_i32_1 = arith.constant 0 : i32
    return %c0_i32, %c0_i32_0 : i32, i32
  }
  func.func @transform_8(%arg0: i32) -> (i32, i32) {
    %c0_i32 = arith.constant 0 : i32
    %c0_i32_0 = arith.constant 0 : i32
    %c0_i32_1 = arith.constant 0 : i32
    return %c0_i32, %c0_i32_0 : i32, i32
  }
  func.func @transform_9(%arg0: i32) -> (i32, i32) {
    %c0_i32 = arith.constant 0 : i32
    %c0_i32_0 = arith.constant 0 : i32
    return %arg0, %c0_i32 : i32, i32
  }
}

</mosaic_0001>

<llo_original>
// kernel: discriminator2_forward.1
$region0: #{discriminator2_forward.1}
  #allocation0 [shape = 'u32[]', space=smem, size = 0x4, offset = 0x4, fixed_abs, tag = 'smem constant byte address 0x4 - core index']
  #allocation1 [shape = 'u32[144,128]{1,0:T(1,128)}', space=vmem, size = 0x12000, scoped, tag = 'internal scratch']
  %s0 = inlined_call_operand.vmem [shape: f32[8,128], index: 0, kind: input, shape index: {}]
  %s1 = inlined_call_operand.hbm [shape: bf16[128,512], index: 1, kind: input, shape index: {}]
  %s2 = inlined_call_operand.vmem [shape: f32[1,512], index: 2, kind: input, shape index: {}]
  %s3 = inlined_call_operand.hbm [shape: bf16[512,384], index: 3, kind: input, shape index: {}]
  %s4 = inlined_call_operand.vmem [shape: f32[1,384], index: 4, kind: input, shape index: {}]
  %s5 = inlined_call_operand.hbm [shape: bf16[384,256], index: 5, kind: input, shape index: {}]
  %s6 = inlined_call_operand.vmem [shape: f32[1,256], index: 6, kind: input, shape index: {}]
  %s7 = inlined_call_operand.hbm [shape: bf16[256,128], index: 7, kind: input, shape index: {}]
  %s8 = inlined_call_operand.vmem [shape: f32[1,128], index: 8, kind: input, shape index: {}]
  %s9 = inlined_call_operand.vmem [shape: f32[8,128], index: 9, kind: output, shape index: {}]
  %s10 = sld [smem:[#allocation0]]
  $region62: #{discriminator2_forward.1} parent=0
    _
  %s12 = ssub.s32 1, %s10
  %s13 = scalar_select 0, %s12, %s10
  $region1: #{discriminator2_forward.1} parent=0
    #allocation2 [shape = 'u8[131072]{0}', space=vmem, size = 0x20000, scoped, tag = 'input window, operand 1, single buffered']
    #allocation3 [shape = 's32[1]{0}', space=sflag, size = 0x4, scoped, tag = 'scoped memory for discriminator2_forward.1']
    #allocation4 [shape = 'u8[393216]{0}', space=vmem, size = 0x60000, scoped, tag = 'input window, operand 3, single buffered']
    #allocation5 [shape = 's32[1]{0}', space=sflag, size = 0x4, scoped, tag = 'scoped memory for discriminator2_forward.1']
    #allocation6 [shape = 'u8[196608]{0}', space=vmem, size = 0x30000, scoped, tag = 'input window, operand 5, single buffered']
    #allocation7 [shape = 'u8[65536]{0}', space=vmem, size = 0x10000, scoped, tag = 'input window, operand 7, single buffered']
    #allocation8 [shape = 's32[1]{0}', space=sflag, size = 0x4, scoped, tag = 'scoped memory for discriminator2_forward.1']
    %14 = vsyncpa [#allocation3], 0
    %15 = vsyncpa [#allocation5], 0
    %16 = vsyncpa [#allocation8], 0
    // Predicated region
    $region2: #{discriminator2_forward.1} parent=1 // pred_check
      _
    $region3: #{discriminator2_forward.1} parent=1 // pred_check_branch
      %18 = sbr.rel (0) target = $region5
    $region4: #{discriminator2_forward.1} parent=1 // pred_region
      _
    $region5: #{discriminator2_forward.1} parent=1 // pred_fallthru
      _
    // Predicated region
    $region6: #{discriminator2_forward.1} parent=1 // pred_check
      _
    $region7: #{discriminator2_forward.1} parent=1 // pred_check_branch
      %20 = sbr.rel (0) target = $region9
    $region8: #{discriminator2_forward.1} parent=1 // pred_region
      %s22 = ssub.s32 4096, 4096
      %23 = vsyncadd [#allocation3], %s22
      %s24 = sshll.u32 [#allocation2], 4
      %s25 = int_to_ptr.vmem [resolvable:$true] %s24
      %30 = dma.hbm_to_vmem [thread:$0]  %s1, 4096, %s25, [#allocation3], 256, 256, 16
    $region9: #{discriminator2_forward.1} parent=1 // pred_fallthru
      _
    // Predicated region
    $region10: #{discriminator2_forward.1} parent=1 // pred_check
      _
    $region11: #{discriminator2_forward.1} parent=1 // pred_check_branch
      %32 = sbr.rel (0) target = $region13
    $region12: #{discriminator2_forward.1} parent=1 // pred_region
      _
    $region13: #{discriminator2_forward.1} parent=1 // pred_fallthru
      _
    // Predicated region
    $region14: #{discriminator2_forward.1} parent=1 // pred_check
      _
    $region15: #{discriminator2_forward.1} parent=1 // pred_check_branch
      %34 = sbr.rel (0) target = $region17
    $region16: #{discriminator2_forward.1} parent=1 // pred_region
      %s36 = ssub.s32 12288, 12288
      %37 = vsyncadd [#allocation5], %s36
      %s38 = sshll.u32 [#allocation4], 4
      %s39 = int_to_ptr.vmem [resolvable:$true] %s38
      %44 = dma.hbm_to_vmem [thread:$0]  %s3, 12288, %s39, [#allocation5], 192, 192, 12
    $region17: #{discriminator2_forward.1} parent=1 // pred_fallthru
      _
    // Predicated region
    $region18: #{discriminator2_forward.1} parent=1 // pred_check
      _
    $region19: #{discriminator2_forward.1} parent=1 // pred_check_branch
      %46 = sbr.rel (0) target = $region21
    $region20: #{discriminator2_forward.1} parent=1 // pred_region
      _
    $region21: #{discriminator2_forward.1} parent=1 // pred_fallthru
      _
    // Predicated region
    $region22: #{discriminator2_forward.1} parent=1 // pred_check
      _
    $region23: #{discriminator2_forward.1} parent=1 // pred_check_branch
      %48 = sbr.rel (0) target = $region25
    $region24: #{discriminator2_forward.1} parent=1 // pred_region
      %s50 = ssub.s32 6144, 6144
      %51 = vsyncadd [#allocation5], %s50
      %s52 = sshll.u32 [#allocation6], 4
      %s53 = int_to_ptr.vmem [resolvable:$true] %s52
      %58 = dma.hbm_to_vmem [thread:$0]  %s5, 6144, %s53, [#allocation5], 128, 128, 8
    $region25: #{discriminator2_forward.1} parent=1 // pred_fallthru
      _
    // Predicated region
    $region26: #{discriminator2_forward.1} parent=1 // pred_check
      _
    $region27: #{discriminator2_forward.1} parent=1 // pred_check_branch
      %60 = sbr.rel (0) target = $region29
    $region28: #{discriminator2_forward.1} parent=1 // pred_region
      _
    $region29: #{discriminator2_forward.1} parent=1 // pred_fallthru
      _
    // Predicated region
    $region30: #{discriminator2_forward.1} parent=1 // pred_check
      _
    $region31: #{discriminator2_forward.1} parent=1 // pred_check_branch
      %62 = sbr.rel (0) target = $region33
    $region32: #{discriminator2_forward.1} parent=1 // pred_region
      %s64 = ssub.s32 2048, 2048
      %65 = vsyncadd [#allocation8], %s64
      %s66 = sshll.u32 [#allocation7], 4
      %s67 = int_to_ptr.vmem [resolvable:$true] %s66
      %72 = dma.hbm_to_vmem [thread:$0]  %s7, 2048, %s67, [#allocation8], 64, 64, 4
    $region33: #{discriminator2_forward.1} parent=1 // pred_fallthru
      _
    // Predicated region
    $region34: #{discriminator2_forward.1} parent=1 // pred_check
      _
    $region35: #{discriminator2_forward.1} parent=1 // pred_check_branch
      %74 = sbr.rel (0) target = $region37
    $region36: #{discriminator2_forward.1} parent=1 // pred_region
      _
    $region37: #{discriminator2_forward.1} parent=1 // pred_fallthru
      _
    // Predicated region
    $region38: #{discriminator2_forward.1} parent=1 // pred_check
      _
    $region39: #{discriminator2_forward.1} parent=1 // pred_check_branch
      %76 = sbr.rel (0) target = $region41
    $region40: #{discriminator2_forward.1} parent=1 // pred_region
      %77 = dma.done [#allocation3], 4096
    $region41: #{discriminator2_forward.1} parent=1 // pred_fallthru
      _
    // Predicated region
    $region42: #{discriminator2_forward.1} parent=1 // pred_check
      _
    $region43: #{discriminator2_forward.1} parent=1 // pred_check_branch
      %79 = sbr.rel (0) target = $region45
    $region44: #{discriminator2_forward.1} parent=1 // pred_region
      %80 = dma.done [#allocation5], 12288
    $region45: #{discriminator2_forward.1} parent=1 // pred_fallthru
      _
    // Predicated region
    $region46: #{discriminator2_forward.1} parent=1 // pred_check
      _
    $region47: #{discriminator2_forward.1} parent=1 // pred_check_branch
      %82 = sbr.rel (0) target = $region49
    $region48: #{discriminator2_forward.1} parent=1 // pred_region
      %83 = dma.done [#allocation5], 6144
    $region49: #{discriminator2_forward.1} parent=1 // pred_fallthru
      _
    // Predicated region
    $region50: #{discriminator2_forward.1} parent=1 // pred_check
      _
    $region51: #{discriminator2_forward.1} parent=1 // pred_check_branch
      %85 = sbr.rel (0) target = $region53
    $region52: #{discriminator2_forward.1} parent=1 // pred_region
      %86 = dma.done [#allocation8], 2048
    $region53: #{discriminator2_forward.1} parent=1 // pred_fallthru
      _
    %v88 = vld [vmem:[%s0] sm:$0xff]
    %v89 = vpack.c.bf16 %v88, %v88
    %v90 = vld [vmem:[#allocation2] sm:$0xff]
    %v91 = vld [vmem:[#allocation2 + $0x8] sm:$0xff]
    %v92 = vld [vmem:[#allocation2 + $0x10] sm:$0xff]
    %v93 = vld [vmem:[#allocation2 + $0x18] sm:$0xff]
    %v94 = vld [vmem:[#allocation2 + $0x20] sm:$0xff]
    %v95 = vld [vmem:[#allocation2 + $0x28] sm:$0xff]
    %v96 = vld [vmem:[#allocation2 + $0x30] sm:$0xff]
    %v97 = vld [vmem:[#allocation2 + $0x38] sm:$0xff]
    %v98 = vld [vmem:[#allocation2 + $0x40] sm:$0xff]
    %v99 = vld [vmem:[#allocation2 + $0x48] sm:$0xff]
    %v100 = vld [vmem:[#allocation2 + $0x50] sm:$0xff]
    %v101 = vld [vmem:[#allocation2 + $0x58] sm:$0xff]
    %v102 = vld [vmem:[#allocation2 + $0x60] sm:$0xff]
    %v103 = vld [vmem:[#allocation2 + $0x68] sm:$0xff]
    %v104 = vld [vmem:[#allocation2 + $0x70] sm:$0xff]
    %v105 = vld [vmem:[#allocation2 + $0x78] sm:$0xff]
    %v106 = vld [vmem:[#allocation2 + $0x80] sm:$0xff]
    %v107 = vld [vmem:[#allocation2 + $0x88] sm:$0xff]
    %v108 = vld [vmem:[#allocation2 + $0x90] sm:$0xff]
    %v109 = vld [vmem:[#allocation2 + $0x98] sm:$0xff]
    %v110 = vld [vmem:[#allocation2 + $0xa0] sm:$0xff]
    %v111 = vld [vmem:[#allocation2 + $0xa8] sm:$0xff]
    %v112 = vld [vmem:[#allocation2 + $0xb0] sm:$0xff]
    %v113 = vld [vmem:[#allocation2 + $0xb8] sm:$0xff]
    %v114 = vld [vmem:[#allocation2 + $0xc0] sm:$0xff]
    %v115 = vld [vmem:[#allocation2 + $0xc8] sm:$0xff]
    %v116 = vld [vmem:[#allocation2 + $0xd0] sm:$0xff]
    %v117 = vld [vmem:[#allocation2 + $0xd8] sm:$0xff]
    %v118 = vld [vmem:[#allocation2 + $0xe0] sm:$0xff]
    %v119 = vld [vmem:[#allocation2 + $0xe8] sm:$0xff]
    %v120 = vld [vmem:[#allocation2 + $0xf0] sm:$0xff]
    %v121 = vld [vmem:[#allocation2 + $0xf8] sm:$0xff]
    %v122 = vld [vmem:[%s2] sm:$0xf]
    %v124 = vlaneseq
    %v125 = vshrl.u32 %v124, 7
    %v126 = vsub.s32 0, %v125
    %v127 = vrot.slane %v122, %v126
    %v128 = vlaneseq
    %v129 = vshrl.u32 %v128, 7
    %v130 = vsub.s32 1, %v129
    %v131 = vrot.slane %v122, %v130
    %v132 = vlaneseq
    %v133 = vshrl.u32 %v132, 7
    %v134 = vsub.s32 2, %v133
    %v135 = vrot.slane %v122, %v134
    %v136 = vlaneseq
    %v137 = vshrl.u32 %v136, 7
    %v138 = vsub.s32 3, %v137
    %v139 = vrot.slane %v122, %v138
    %v176 = vunpack.c.l.b16 %v90
    %v177 = vunpack.c.h.b16 %v90
    %v178 = vunpack.c.l.b16 %v91
    %v179 = vunpack.c.h.b16 %v91
    %v180 = vunpack.c.l.b16 %v92
    %v181 = vunpack.c.h.b16 %v92
    %v182 = vunpack.c.l.b16 %v93
    %v183 = vunpack.c.h.b16 %v93
    %v184 = vunpack.c.l.b16 %v94
    %v185 = vunpack.c.h.b16 %v94
    %v186 = vunpack.c.l.b16 %v95
    %v187 = vunpack.c.h.b16 %v95
    %v188 = vunpack.c.l.b16 %v96
    %v189 = vunpack.c.h.b16 %v96
    %v190 = vunpack.c.l.b16 %v97
    %v191 = vunpack.c.h.b16 %v97
    %v192 = vunpack.c.l.b16 %v98
    %v193 = vunpack.c.h.b16 %v98
    %v194 = vunpack.c.l.b16 %v99
    %v195 = vunpack.c.h.b16 %v99
    %v196 = vunpack.c.l.b16 %v100
    %v197 = vunpack.c.h.b16 %v100
    %v198 = vunpack.c.l.b16 %v101
    %v199 = vunpack.c.h.b16 %v101
    %v200 = vunpack.c.l.b16 %v102
    %v201 = vunpack.c.h.b16 %v102
    %v202 = vunpack.c.l.b16 %v103
    %v203 = vunpack.c.h.b16 %v103
    %v204 = vunpack.c.l.b16 %v104
    %v205 = vunpack.c.h.b16 %v104
    %v206 = vunpack.c.l.b16 %v105
    %v207 = vunpack.c.h.b16 %v105
    %v208 = vunpack.c.l.b16 %v106
    %v209 = vunpack.c.h.b16 %v106
    %v210 = vunpack.c.l.b16 %v107
    %v211 = vunpack.c.h.b16 %v107
    %v212 = vunpack.c.l.b16 %v108
    %v213 = vunpack.c.h.b16 %v108
    %v214 = vunpack.c.l.b16 %v109
    %v215 = vunpack.c.h.b16 %v109
    %v216 = vunpack.c.l.b16 %v110
    %v217 = vunpack.c.h.b16 %v110
    %v218 = vunpack.c.l.b16 %v111
    %v219 = vunpack.c.h.b16 %v111
    %v220 = vunpack.c.l.b16 %v112
    %v221 = vunpack.c.h.b16 %v112
    %v222 = vunpack.c.l.b16 %v113
    %v223 = vunpack.c.h.b16 %v113
    %v224 = vunpack.c.l.b16 %v114
    %v225 = vunpack.c.h.b16 %v114
    %v226 = vunpack.c.l.b16 %v115
    %v227 = vunpack.c.h.b16 %v115
    %v228 = vunpack.c.l.b16 %v116
    %v229 = vunpack.c.h.b16 %v116
    %v230 = vunpack.c.l.b16 %v117
    %v231 = vunpack.c.h.b16 %v117
    %v232 = vunpack.c.l.b16 %v118
    %v233 = vunpack.c.h.b16 %v118
    %v234 = vunpack.c.l.b16 %v119
    %v235 = vunpack.c.h.b16 %v119
    %v236 = vunpack.c.l.b16 %v120
    %v237 = vunpack.c.h.b16 %v120
    %v238 = vunpack.c.l.b16 %v121
    %v239 = vunpack.c.h.b16 %v121
    %v240 = vpack.c.b16 %v180, %v176
    %v241 = vpack.c.b16 %v181, %v177
    %v242 = vpack.c.b16 %v182, %v178
    %v243 = vpack.c.b16 %v183, %v179
    %v244 = vpack.c.b16 %v188, %v184
    %v245 = vpack.c.b16 %v189, %v185
    %v246 = vpack.c.b16 %v190, %v186
    %v247 = vpack.c.b16 %v191, %v187
    %v248 = vpack.c.b16 %v196, %v192
    %v249 = vpack.c.b16 %v197, %v193
    %v250 = vpack.c.b16 %v198, %v194
    %v251 = vpack.c.b16 %v199, %v195
    %v252 = vpack.c.b16 %v204, %v200
    %v253 = vpack.c.b16 %v205, %v201
    %v254 = vpack.c.b16 %v206, %v202
    %v255 = vpack.c.b16 %v207, %v203
    %v256 = vpack.c.b16 %v212, %v208
    %v257 = vpack.c.b16 %v213, %v209
    %v258 = vpack.c.b16 %v214, %v210
    %v259 = vpack.c.b16 %v215, %v211
    %v260 = vpack.c.b16 %v220, %v216
    %v261 = vpack.c.b16 %v221, %v217
    %v262 = vpack.c.b16 %v222, %v218
    %v263 = vpack.c.b16 %v223, %v219
    %v264 = vpack.c.b16 %v228, %v224
    %v265 = vpack.c.b16 %v229, %v225
    %v266 = vpack.c.b16 %v230, %v226
    %v267 = vpack.c.b16 %v231, %v227
    %v268 = vpack.c.b16 %v236, %v232
    %v269 = vpack.c.b16 %v237, %v233
    %v270 = vpack.c.b16 %v238, %v234
    %v271 = vpack.c.b16 %v239, %v235
    %304 = vmatprep.subr.bf16.mxu0 %v241
    %305 = vmatpush1.bf16.msra.mxu0 %v240
    %306 = vmatprep.subr.bf16.mxu0 %v245
    %307 = vmatpush1.bf16.msra.mxu0 %v244
    %308 = vmatprep.subr.bf16.mxu0 %v249
    %309 = vmatpush1.bf16.msra.mxu0 %v248
    %310 = vmatprep.subr.bf16.mxu0 %v253
    %311 = vmatpush1.bf16.msra.mxu0 %v252
    %312 = vmatprep.subr.bf16.mxu0 %v257
    %313 = vmatpush1.bf16.msra.mxu0 %v256
    %314 = vmatprep.subr.bf16.mxu0 %v261
    %315 = vmatpush1.bf16.msra.mxu0 %v260
    %316 = vmatprep.subr.bf16.mxu0 %v265
    %317 = vmatpush1.bf16.msra.mxu0 %v264
    %318 = vmatprep.subr.bf16.mxu0 %v269
    %319 = vmatpush1.bf16.msra.mxu0 %v268
    %320 = vmatprep.subr.bf16.mxu0 0
    %321 = vmatpush1.bf16.msra.mxu0 0
    %322 = vmatprep.subr.bf16.mxu0 0
    %323 = vmatpush1.bf16.msra.mxu0 0
    %324 = vmatprep.subr.bf16.mxu0 0
    %325 = vmatpush1.bf16.msra.mxu0 0
    %326 = vmatprep.subr.bf16.mxu0 0
    %327 = vmatpush1.bf16.msra.mxu0 0
    %328 = vmatprep.subr.bf16.mxu0 0
    %329 = vmatpush1.bf16.msra.mxu0 0
    %330 = vmatprep.subr.bf16.mxu0 0
    %331 = vmatpush1.bf16.msra.mxu0 0
    %332 = vmatprep.subr.bf16.mxu0 0
    %333 = vmatpush1.bf16.msra.mxu0 0
    %334 = vmatprep.subr.bf16.mxu0 0
    %335 = vmatpush1.bf16.msra.mxu0 0
    %336 = vmatprep.mubr.bf16.mxu0 0
    %337 = vmatmul.mubr.bf16.gmra.mrb[0].mxu0 %v89
    %v338 = vpop.f32.mrb[0].mxu0
    %v339 = vadd.f32 %v127, %v338
    %v340 = vpop.f32.mrb[0].mxu0
    %v341 = vadd.f32 %v131, %v340
    %v342 = vpop.f32.mrb[0].mxu0
    %v343 = vpop.f32.mrb[0].mxu0
    %344 = vdwg.mxu0
    %345 = vmatprep.subr.bf16.mxu0 %v243
    %346 = vmatpush1.bf16.msra.mxu0 %v242
    %347 = vmatprep.subr.bf16.mxu0 %v247
    %348 = vmatpush1.bf16.msra.mxu0 %v246
    %349 = vmatprep.subr.bf16.mxu0 %v251
    %350 = vmatpush1.bf16.msra.mxu0 %v250
    %351 = vmatprep.subr.bf16.mxu0 %v255
    %352 = vmatpush1.bf16.msra.mxu0 %v254
    %353 = vmatprep.subr.bf16.mxu0 %v259
    %354 = vmatpush1.bf16.msra.mxu0 %v258
    %355 = vmatprep.subr.bf16.mxu0 %v263
    %356 = vmatpush1.bf16.msra.mxu0 %v262
    %357 = vmatprep.subr.bf16.mxu0 %v267
    %358 = vmatpush1.bf16.msra.mxu0 %v266
    %359 = vmatprep.subr.bf16.mxu0 %v271
    %360 = vmatpush1.bf16.msra.mxu0 %v270
    %361 = vmatprep.subr.bf16.mxu0 0
    %362 = vmatpush1.bf16.msra.mxu0 0
    %363 = vmatprep.subr.bf16.mxu0 0
    %364 = vmatpush1.bf16.msra.mxu0 0
    %365 = vmatprep.subr.bf16.mxu0 0
    %366 = vmatpush1.bf16.msra.mxu0 0
    %367 = vmatprep.subr.bf16.mxu0 0
    %368 = vmatpush1.bf16.msra.mxu0 0
    %369 = vmatprep.subr.bf16.mxu0 0
    %370 = vmatpush1.bf16.msra.mxu0 0
    %371 = vmatprep.subr.bf16.mxu0 0
    %372 = vmatpush1.bf16.msra.mxu0 0
    %373 = vmatprep.subr.bf16.mxu0 0
    %374 = vmatpush1.bf16.msra.mxu0 0
    %375 = vmatprep.subr.bf16.mxu0 0
    %376 = vmatpush1.bf16.msra.mxu0 0
    %377 = vmatprep.mubr.bf16.mxu0 0
    %378 = vmatmul.mubr.bf16.gmra.mrb[0].mxu0 %v89
    %v379 = vpop.f32.mrb[0].mxu0
    %v380 = vadd.f32 %v135, %v379
    %v381 = vpop.f32.mrb[0].mxu0
    %v382 = vadd.f32 %v139, %v381
    %v383 = vpop.f32.mrb[0].mxu0
    %v384 = vpop.f32.mrb[0].mxu0
    %385 = vdwg.mxu0
    %vm386 = vcmp.gt.f32.partialorder %v339, 0.0
    %vm387 = vcmp.gt.f32.partialorder %v341, 0.0
    %vm388 = vcmp.gt.f32.partialorder %v380, 0.0
    %vm389 = vcmp.gt.f32.partialorder %v382, 0.0
    %v390 = vmul.f32 %v339, 0.2
    %v391 = vmul.f32 %v341, 0.2
    %v392 = vmul.f32 %v380, 0.2
    %v393 = vmul.f32 %v382, 0.2
    %v394 = vsel %vm386, %v339, %v390
    %v395 = vsel %vm387, %v341, %v391
    %v396 = vsel %vm388, %v380, %v392
    %v397 = vsel %vm389, %v382, %v393
    %v398 = vpack.c.bf16 %v394, %v394
    %v399 = vpack.c.bf16 %v395, %v395
    %v400 = vpack.c.bf16 %v396, %v396
    %v401 = vpack.c.bf16 %v397, %v397
    %v402 = vld [vmem:[#allocation4] sm:$0xff]
    %v403 = vld [vmem:[#allocation4 + $0x8] sm:$0xf]
    %v404 = vld [vmem:[#allocation4 + $0xc] sm:$0xff]
    %v405 = vld [vmem:[#allocation4 + $0x14] sm:$0xf]
    %v406 = vld [vmem:[#allocation4 + $0x18] sm:$0xff]
    %v407 = vld [vmem:[#allocation4 + $0x20] sm:$0xf]
    %v408 = vld [vmem:[#allocation4 + $0x24] sm:$0xff]
    %v409 = vld [vmem:[#allocation4 + $0x2c] sm:$0xf]
    %v410 = vld [vmem:[#allocation4 + $0x30] sm:$0xff]
    %v411 = vld [vmem:[#allocation4 + $0x38] sm:$0xf]
    %v412 = vld [vmem:[#allocation4 + $0x3c] sm:$0xff]
    %v413 = vld [vmem:[#allocation4 + $0x44] sm:$0xf]
    %v414 = vld [vmem:[#allocation4 + $0x48] sm:$0xff]
    %v415 = vld [vmem:[#allocation4 + $0x50] sm:$0xf]
    %v416 = vld [vmem:[#allocation4 + $0x54] sm:$0xff]
    %v417 = vld [vmem:[#allocation4 + $0x5c] sm:$0xf]
    %v418 = vld [vmem:[#allocation4 + $0x60] sm:$0xff]
    %v419 = vld [vmem:[#allocation4 + $0x68] sm:$0xf]
    %v420 = vld [vmem:[#allocation4 + $0x6c] sm:$0xff]
    %v421 = vld [vmem:[#allocation4 + $0x74] sm:$0xf]
    %v422 = vld [vmem:[#allocation4 + $0x78] sm:$0xff]
    %v423 = vld [vmem:[#allocation4 + $0x80] sm:$0xf]
    %v424 = vld [vmem:[#allocation4 + $0x84] sm:$0xff]
    %v425 = vld [vmem:[#allocation4 + $0x8c] sm:$0xf]
    %v426 = vld [vmem:[#allocation4 + $0x90] sm:$0xff]
    %v427 = vld [vmem:[#allocation4 + $0x98] sm:$0xf]
    %v428 = vld [vmem:[#allocation4 + $0x9c] sm:$0xff]
    %v429 = vld [vmem:[#allocation4 + $0xa4] sm:$0xf]
    %v430 = vld [vmem:[#allocation4 + $0xa8] sm:$0xff]
    %v431 = vld [vmem:[#allocation4 + $0xb0] sm:$0xf]
    %v432 = vld [vmem:[#allocation4 + $0xb4] sm:$0xff]
    %v433 = vld [vmem:[#allocation4 + $0xbc] sm:$0xf]
    %v434 = vld [vmem:[#allocation4 + $0xc0] sm:$0xff]
    %v435 = vld [vmem:[#allocation4 + $0xc8] sm:$0xf]
    %v436 = vld [vmem:[#allocation4 + $0xcc] sm:$0xff]
    %v437 = vld [vmem:[#allocation4 + $0xd4] sm:$0xf]
    %v438 = vld [vmem:[#allocation4 + $0xd8] sm:$0xff]
    %v439 = vld [vmem:[#allocation4 + $0xe0] sm:$0xf]
    %v440 = vld [vmem:[#allocation4 + $0xe4] sm:$0xff]
    %v441 = vld [vmem:[#allocation4 + $0xec] sm:$0xf]
    %v442 = vld [vmem:[#allocation4 + $0xf0] sm:$0xff]
    %v443 = vld [vmem:[#allocation4 + $0xf8] sm:$0xf]
    %v444 = vld [vmem:[#allocation4 + $0xfc] sm:$0xff]
    %v445 = vld [vmem:[#allocation4 + $0x104] sm:$0xf]
    %v446 = vld [vmem:[#allocation4 + $0x108] sm:$0xff]
    %v447 = vld [vmem:[#allocation4 + $0x110] sm:$0xf]
    %v448 = vld [vmem:[#allocation4 + $0x114] sm:$0xff]
    %v449 = vld [vmem:[#allocation4 + $0x11c] sm:$0xf]
    %v450 = vld [vmem:[#allocation4 + $0x120] sm:$0xff]
    %v451 = vld [vmem:[#allocation4 + $0x128] sm:$0xf]
    %v452 = vld [vmem:[#allocation4 + $0x12c] sm:$0xff]
    %v453 = vld [vmem:[#allocation4 + $0x134] sm:$0xf]
    %v454 = vld [vmem:[#allocation4 + $0x138] sm:$0xff]
    %v455 = vld [vmem:[#allocation4 + $0x140] sm:$0xf]
    %v456 = vld [vmem:[#allocation4 + $0x144] sm:$0xff]
    %v457 = vld [vmem:[#allocation4 + $0x14c] sm:$0xf]
    %v458 = vld [vmem:[#allocation4 + $0x150] sm:$0xff]
    %v459 = vld [vmem:[#allocation4 + $0x158] sm:$0xf]
    %v460 = vld [vmem:[#allocation4 + $0x15c] sm:$0xff]
    %v461 = vld [vmem:[#allocation4 + $0x164] sm:$0xf]
    %v462 = vld [vmem:[#allocation4 + $0x168] sm:$0xff]
    %v463 = vld [vmem:[#allocation4 + $0x170] sm:$0xf]
    %v464 = vld [vmem:[#allocation4 + $0x174] sm:$0xff]
    %v465 = vld [vmem:[#allocation4 + $0x17c] sm:$0xf]
    %v466 = vld [vmem:[#allocation4 + $0x180] sm:$0xff]
    %v467 = vld [vmem:[#allocation4 + $0x188] sm:$0xf]
    %v468 = vld [vmem:[#allocation4 + $0x18c] sm:$0xff]
    %v469 = vld [vmem:[#allocation4 + $0x194] sm:$0xf]
    %v470 = vld [vmem:[#allocation4 + $0x198] sm:$0xff]
    %v471 = vld [vmem:[#allocation4 + $0x1a0] sm:$0xf]
    %v472 = vld [vmem:[#allocation4 + $0x1a4] sm:$0xff]
    %v473 = vld [vmem:[#allocation4 + $0x1ac] sm:$0xf]
    %v474 = vld [vmem:[#allocation4 + $0x1b0] sm:$0xff]
    %v475 = vld [vmem:[#allocation4 + $0x1b8] sm:$0xf]
    %v476 = vld [vmem:[#allocation4 + $0x1bc] sm:$0xff]
    %v477 = vld [vmem:[#allocation4 + $0x1c4] sm:$0xf]
    %v478 = vld [vmem:[#allocation4 + $0x1c8] sm:$0xff]
    %v479 = vld [vmem:[#allocation4 + $0x1d0] sm:$0xf]
    %v480 = vld [vmem:[#allocation4 + $0x1d4] sm:$0xff]
    %v481 = vld [vmem:[#allocation4 + $0x1dc] sm:$0xf]
    %v482 = vld [vmem:[#allocation4 + $0x1e0] sm:$0xff]
    %v483 = vld [vmem:[#allocation4 + $0x1e8] sm:$0xf]
    %v484 = vld [vmem:[#allocation4 + $0x1ec] sm:$0xff]
    %v485 = vld [vmem:[#allocation4 + $0x1f4] sm:$0xf]
    %v486 = vld [vmem:[#allocation4 + $0x1f8] sm:$0xff]
    %v487 = vld [vmem:[#allocation4 + $0x200] sm:$0xf]
    %v488 = vld [vmem:[#allocation4 + $0x204] sm:$0xff]
    %v489 = vld [vmem:[#allocation4 + $0x20c] sm:$0xf]
    %v490 = vld [vmem:[#allocation4 + $0x210] sm:$0xff]
    %v491 = vld [vmem:[#allocation4 + $0x218] sm:$0xf]
    %v492 = vld [vmem:[#allocation4 + $0x21c] sm:$0xff]
    %v493 = vld [vmem:[#allocation4 + $0x224] sm:$0xf]
    %v494 = vld [vmem:[#allocation4 + $0x228] sm:$0xff]
    %v495 = vld [vmem:[#allocation4 + $0x230] sm:$0xf]
    %v496 = vld [vmem:[#allocation4 + $0x234] sm:$0xff]
    %v497 = vld [vmem:[#allocation4 + $0x23c] sm:$0xf]
    %v498 = vld [vmem:[#allocation4 + $0x240] sm:$0xff]
    %v499 = vld [vmem:[#allocation4 + $0x248] sm:$0xf]
    %v500 = vld [vmem:[#allocation4 + $0x24c] sm:$0xff]
    %v501 = vld [vmem:[#allocation4 + $0x254] sm:$0xf]
    %v502 = vld [vmem:[#allocation4 + $0x258] sm:$0xff]
    %v503 = vld [vmem:[#allocation4 + $0x260] sm:$0xf]
    %v504 = vld [vmem:[#allocation4 + $0x264] sm:$0xff]
    %v505 = vld [vmem:[#allocation4 + $0x26c] sm:$0xf]
    %v506 = vld [vmem:[#allocation4 + $0x270] sm:$0xff]
    %v507 = vld [vmem:[#allocation4 + $0x278] sm:$0xf]
    %v508 = vld [vmem:[#allocation4 + $0x27c] sm:$0xff]
    %v509 = vld [vmem:[#allocation4 + $0x284] sm:$0xf]
    %v510 = vld [vmem:[#allocation4 + $0x288] sm:$0xff]
    %v511 = vld [vmem:[#allocation4 + $0x290] sm:$0xf]
    %v512 = vld [vmem:[#allocation4 + $0x294] sm:$0xff]
    %v513 = vld [vmem:[#allocation4 + $0x29c] sm:$0xf]
    %v514 = vld [vmem:[#allocation4 + $0x2a0] sm:$0xff]
    %v515 = vld [vmem:[#allocation4 + $0x2a8] sm:$0xf]
    %v516 = vld [vmem:[#allocation4 + $0x2ac] sm:$0xff]
    %v517 = vld [vmem:[#allocation4 + $0x2b4] sm:$0xf]
    %v518 = vld [vmem:[#allocation4 + $0x2b8] sm:$0xff]
    %v519 = vld [vmem:[#allocation4 + $0x2c0] sm:$0xf]
    %v520 = vld [vmem:[#allocation4 + $0x2c4] sm:$0xff]
    %v521 = vld [vmem:[#allocation4 + $0x2cc] sm:$0xf]
    %v522 = vld [vmem:[#allocation4 + $0x2d0] sm:$0xff]
    %v523 = vld [vmem:[#allocation4 + $0x2d8] sm:$0xf]
    %v524 = vld [vmem:[#allocation4 + $0x2dc] sm:$0xff]
    %v525 = vld [vmem:[#allocation4 + $0x2e4] sm:$0xf]
    %v526 = vld [vmem:[#allocation4 + $0x2e8] sm:$0xff]
    %v527 = vld [vmem:[#allocation4 + $0x2f0] sm:$0xf]
    %v528 = vld [vmem:[#allocation4 + $0x2f4] sm:$0xff]
    %v529 = vld [vmem:[#allocation4 + $0x2fc] sm:$0xf]
    %v530 = vld [vmem:[%s4] sm:$0x7]
    %v532 = vlaneseq
    %v533 = vshrl.u32 %v532, 7
    %v534 = vsub.s32 0, %v533
    %v535 = vrot.slane %v530, %v534
    %v536 = vlaneseq
    %v537 = vshrl.u32 %v536, 7
    %v538 = vsub.s32 1, %v537
    %v539 = vrot.slane %v530, %v538
    %v540 = vlaneseq
    %v541 = vshrl.u32 %v540, 7
    %v542 = vsub.s32 2, %v541
    %v543 = vrot.slane %v530, %v542
    %v675 = vunpack.c.l.b16 %v402
    %v676 = vunpack.c.h.b16 %v402
    %v677 = vunpack.c.l.b16 %v403
    %v678 = vunpack.c.l.b16 %v404
    %v679 = vunpack.c.h.b16 %v404
    %v680 = vunpack.c.l.b16 %v405
    %v681 = vunpack.c.l.b16 %v406
    %v682 = vunpack.c.h.b16 %v406
    %v683 = vunpack.c.l.b16 %v407
    %v684 = vunpack.c.l.b16 %v408
    %v685 = vunpack.c.h.b16 %v408
    %v686 = vunpack.c.l.b16 %v409
    %v687 = vunpack.c.l.b16 %v410
    %v688 = vunpack.c.h.b16 %v410
    %v689 = vunpack.c.l.b16 %v411
    %v690 = vunpack.c.l.b16 %v412
    %v691 = vunpack.c.h.b16 %v412
    %v692 = vunpack.c.l.b16 %v413
    %v693 = vunpack.c.l.b16 %v414
    %v694 = vunpack.c.h.b16 %v414
    %v695 = vunpack.c.l.b16 %v415
    %v696 = vunpack.c.l.b16 %v416
    %v697 = vunpack.c.h.b16 %v416
    %v698 = vunpack.c.l.b16 %v417
    %v699 = vunpack.c.l.b16 %v418
    %v700 = vunpack.c.h.b16 %v418
    %v701 = vunpack.c.l.b16 %v419
    %v702 = vunpack.c.l.b16 %v420
    %v703 = vunpack.c.h.b16 %v420
    %v704 = vunpack.c.l.b16 %v421
    %v705 = vunpack.c.l.b16 %v422
    %v706 = vunpack.c.h.b16 %v422
    %v707 = vunpack.c.l.b16 %v423
    %v708 = vunpack.c.l.b16 %v424
    %v709 = vunpack.c.h.b16 %v424
    %v710 = vunpack.c.l.b16 %v425
    %v711 = vunpack.c.l.b16 %v426
    %v712 = vunpack.c.h.b16 %v426
    %v713 = vunpack.c.l.b16 %v427
    %v714 = vunpack.c.l.b16 %v428
    %v715 = vunpack.c.h.b16 %v428
    %v716 = vunpack.c.l.b16 %v429
    %v717 = vunpack.c.l.b16 %v430
    %v718 = vunpack.c.h.b16 %v430
    %v719 = vunpack.c.l.b16 %v431
    %v720 = vunpack.c.l.b16 %v432
    %v721 = vunpack.c.h.b16 %v432
    %v722 = vunpack.c.l.b16 %v433
    %v723 = vunpack.c.l.b16 %v434
    %v724 = vunpack.c.h.b16 %v434
    %v725 = vunpack.c.l.b16 %v435
    %v726 = vunpack.c.l.b16 %v436
    %v727 = vunpack.c.h.b16 %v436
    %v728 = vunpack.c.l.b16 %v437
    %v729 = vunpack.c.l.b16 %v438
    %v730 = vunpack.c.h.b16 %v438
    %v731 = vunpack.c.l.b16 %v439
    %v732 = vunpack.c.l.b16 %v440
    %v733 = vunpack.c.h.b16 %v440
    %v734 = vunpack.c.l.b16 %v441
    %v735 = vunpack.c.l.b16 %v442
    %v736 = vunpack.c.h.b16 %v442
    %v737 = vunpack.c.l.b16 %v443
    %v738 = vunpack.c.l.b16 %v444
    %v739 = vunpack.c.h.b16 %v444
    %v740 = vunpack.c.l.b16 %v445
    %v741 = vunpack.c.l.b16 %v446
    %v742 = vunpack.c.h.b16 %v446
    %v743 = vunpack.c.l.b16 %v447
    %v744 = vunpack.c.l.b16 %v448
    %v745 = vunpack.c.h.b16 %v448
    %v746 = vunpack.c.l.b16 %v449
    %v747 = vunpack.c.l.b16 %v450
    %v748 = vunpack.c.h.b16 %v450
    %v749 = vunpack.c.l.b16 %v451
    %v750 = vunpack.c.l.b16 %v452
    %v751 = vunpack.c.h.b16 %v452
    %v752 = vunpack.c.l.b16 %v453
    %v753 = vunpack.c.l.b16 %v454
    %v754 = vunpack.c.h.b16 %v454
    %v755 = vunpack.c.l.b16 %v455
    %v756 = vunpack.c.l.b16 %v456
    %v757 = vunpack.c.h.b16 %v456
    %v758 = vunpack.c.l.b16 %v457
    %v759 = vunpack.c.l.b16 %v458
    %v760 = vunpack.c.h.b16 %v458
    %v761 = vunpack.c.l.b16 %v459
    %v762 = vunpack.c.l.b16 %v460
    %v763 = vunpack.c.h.b16 %v460
    %v764 = vunpack.c.l.b16 %v461
    %v765 = vunpack.c.l.b16 %v462
    %v766 = vunpack.c.h.b16 %v462
    %v767 = vunpack.c.l.b16 %v463
    %v768 = vunpack.c.l.b16 %v464
    %v769 = vunpack.c.h.b16 %v464
    %v770 = vunpack.c.l.b16 %v465
    %v771 = vunpack.c.l.b16 %v466
    %v772 = vunpack.c.h.b16 %v466
    %v773 = vunpack.c.l.b16 %v467
    %v774 = vunpack.c.l.b16 %v468
    %v775 = vunpack.c.h.b16 %v468
    %v776 = vunpack.c.l.b16 %v469
    %v777 = vunpack.c.l.b16 %v470
    %v778 = vunpack.c.h.b16 %v470
    %v779 = vunpack.c.l.b16 %v471
    %v780 = vunpack.c.l.b16 %v472
    %v781 = vunpack.c.h.b16 %v472
    %v782 = vunpack.c.l.b16 %v473
    %v783 = vunpack.c.l.b16 %v474
    %v784 = vunpack.c.h.b16 %v474
    %v785 = vunpack.c.l.b16 %v475
    %v786 = vunpack.c.l.b16 %v476
    %v787 = vunpack.c.h.b16 %v476
    %v788 = vunpack.c.l.b16 %v477
    %v789 = vunpack.c.l.b16 %v478
    %v790 = vunpack.c.h.b16 %v478
    %v791 = vunpack.c.l.b16 %v479
    %v792 = vunpack.c.l.b16 %v480
    %v793 = vunpack.c.h.b16 %v480
    %v794 = vunpack.c.l.b16 %v481
    %v795 = vunpack.c.l.b16 %v482
    %v796 = vunpack.c.h.b16 %v482
    %v797 = vunpack.c.l.b16 %v483
    %v798 = vunpack.c.l.b16 %v484
    %v799 = vunpack.c.h.b16 %v484
    %v800 = vunpack.c.l.b16 %v485
    %v801 = vunpack.c.l.b16 %v486
    %v802 = vunpack.c.h.b16 %v486
    %v803 = vunpack.c.l.b16 %v487
    %v804 = vunpack.c.l.b16 %v488
    %v805 = vunpack.c.h.b16 %v488
    %v806 = vunpack.c.l.b16 %v489
    %v807 = vunpack.c.l.b16 %v490
    %v808 = vunpack.c.h.b16 %v490
    %v809 = vunpack.c.l.b16 %v491
    %v810 = vunpack.c.l.b16 %v492
    %v811 = vunpack.c.h.b16 %v492
    %v812 = vunpack.c.l.b16 %v493
    %v813 = vunpack.c.l.b16 %v494
    %v814 = vunpack.c.h.b16 %v494
    %v815 = vunpack.c.l.b16 %v495
    %v816 = vunpack.c.l.b16 %v496
    %v817 = vunpack.c.h.b16 %v496
    %v818 = vunpack.c.l.b16 %v497
    %v819 = vunpack.c.l.b16 %v498
    %v820 = vunpack.c.h.b16 %v498
    %v821 = vunpack.c.l.b16 %v499
    %v822 = vunpack.c.l.b16 %v500
    %v823 = vunpack.c.h.b16 %v500
    %v824 = vunpack.c.l.b16 %v501
    %v825 = vunpack.c.l.b16 %v502
    %v826 = vunpack.c.h.b16 %v502
    %v827 = vunpack.c.l.b16 %v503
    %v828 = vunpack.c.l.b16 %v504
    %v829 = vunpack.c.h.b16 %v504
    %v830 = vunpack.c.l.b16 %v505
    %v831 = vunpack.c.l.b16 %v506
    %v832 = vunpack.c.h.b16 %v506
    %v833 = vunpack.c.l.b16 %v507
    %v834 = vunpack.c.l.b16 %v508
    %v835 = vunpack.c.h.b16 %v508
    %v836 = vunpack.c.l.b16 %v509
    %v837 = vunpack.c.l.b16 %v510
    %v838 = vunpack.c.h.b16 %v510
    %v839 = vunpack.c.l.b16 %v511
    %v840 = vunpack.c.l.b16 %v512
    %v841 = vunpack.c.h.b16 %v512
    %v842 = vunpack.c.l.b16 %v513
    %v843 = vunpack.c.l.b16 %v514
    %v844 = vunpack.c.h.b16 %v514
    %v845 = vunpack.c.l.b16 %v515
    %v846 = vunpack.c.l.b16 %v516
    %v847 = vunpack.c.h.b16 %v516
    %v848 = vunpack.c.l.b16 %v517
    %v849 = vunpack.c.l.b16 %v518
    %v850 = vunpack.c.h.b16 %v518
    %v851 = vunpack.c.l.b16 %v519
    %v852 = vunpack.c.l.b16 %v520
    %v853 = vunpack.c.h.b16 %v520
    %v854 = vunpack.c.l.b16 %v521
    %v855 = vunpack.c.l.b16 %v522
    %v856 = vunpack.c.h.b16 %v522
    %v857 = vunpack.c.l.b16 %v523
    %v858 = vunpack.c.l.b16 %v524
    %v859 = vunpack.c.h.b16 %v524
    %v860 = vunpack.c.l.b16 %v525
    %v861 = vunpack.c.l.b16 %v526
    %v862 = vunpack.c.h.b16 %v526
    %v863 = vunpack.c.l.b16 %v527
    %v864 = vunpack.c.l.b16 %v528
    %v865 = vunpack.c.h.b16 %v528
    %v866 = vunpack.c.l.b16 %v529
    %v867 = vpack.c.b16 %v678, %v675
    %v868 = vpack.c.b16 %v679, %v676
    %v869 = vpack.c.b16 %v680, %v677
    %v870 = vpack.c.b16 %v684, %v681
    %v871 = vpack.c.b16 %v685, %v682
    %v872 = vpack.c.b16 %v686, %v683
    %v873 = vpack.c.b16 %v690, %v687
    %v874 = vpack.c.b16 %v691, %v688
    %v875 = vpack.c.b16 %v692, %v689
    %v876 = vpack.c.b16 %v696, %v693
    %v877 = vpack.c.b16 %v697, %v694
    %v878 = vpack.c.b16 %v698, %v695
    %v879 = vpack.c.b16 %v702, %v699
    %v880 = vpack.c.b16 %v703, %v700
    %v881 = vpack.c.b16 %v704, %v701
    %v882 = vpack.c.b16 %v708, %v705
    %v883 = vpack.c.b16 %v709, %v706
    %v884 = vpack.c.b16 %v710, %v707
    %v885 = vpack.c.b16 %v714, %v711
    %v886 = vpack.c.b16 %v715, %v712
    %v887 = vpack.c.b16 %v716, %v713
    %v888 = vpack.c.b16 %v720, %v717
    %v889 = vpack.c.b16 %v721, %v718
    %v890 = vpack.c.b16 %v722, %v719
    %v891 = vpack.c.b16 %v726, %v723
    %v892 = vpack.c.b16 %v727, %v724
    %v893 = vpack.c.b16 %v728, %v725
    %v894 = vpack.c.b16 %v732, %v729
    %v895 = vpack.c.b16 %v733, %v730
    %v896 = vpack.c.b16 %v734, %v731
    %v897 = vpack.c.b16 %v738, %v735
    %v898 = vpack.c.b16 %v739, %v736
    %v899 = vpack.c.b16 %v740, %v737
    %v900 = vpack.c.b16 %v744, %v741
    %v901 = vpack.c.b16 %v745, %v742
    %v902 = vpack.c.b16 %v746, %v743
    %v903 = vpack.c.b16 %v750, %v747
    %v904 = vpack.c.b16 %v751, %v748
    %v905 = vpack.c.b16 %v752, %v749
    %v906 = vpack.c.b16 %v756, %v753
    %v907 = vpack.c.b16 %v757, %v754
    %v908 = vpack.c.b16 %v758, %v755
    %v909 = vpack.c.b16 %v762, %v759
    %v910 = vpack.c.b16 %v763, %v760
    %v911 = vpack.c.b16 %v764, %v761
    %v912 = vpack.c.b16 %v768, %v765
    %v913 = vpack.c.b16 %v769, %v766
    %v914 = vpack.c.b16 %v770, %v767
    %v915 = vpack.c.b16 %v774, %v771
    %v916 = vpack.c.b16 %v775, %v772
    %v917 = vpack.c.b16 %v776, %v773
    %v918 = vpack.c.b16 %v780, %v777
    %v919 = vpack.c.b16 %v781, %v778
    %v920 = vpack.c.b16 %v782, %v779
    %v921 = vpack.c.b16 %v786, %v783
    %v922 = vpack.c.b16 %v787, %v784
    %v923 = vpack.c.b16 %v788, %v785
    %v924 = vpack.c.b16 %v792, %v789
    %v925 = vpack.c.b16 %v793, %v790
    %v926 = vpack.c.b16 %v794, %v791
    %v927 = vpack.c.b16 %v798, %v795
    %v928 = vpack.c.b16 %v799, %v796
    %v929 = vpack.c.b16 %v800, %v797
    %v930 = vpack.c.b16 %v804, %v801
    %v931 = vpack.c.b16 %v805, %v802
    %v932 = vpack.c.b16 %v806, %v803
    %v933 = vpack.c.b16 %v810, %v807
    %v934 = vpack.c.b16 %v811, %v808
    %v935 = vpack.c.b16 %v812, %v809
    %v936 = vpack.c.b16 %v816, %v813
    %v937 = vpack.c.b16 %v817, %v814
    %v938 = vpack.c.b16 %v818, %v815
    %v939 = vpack.c.b16 %v822, %v819
    %v940 = vpack.c.b16 %v823, %v820
    %v941 = vpack.c.b16 %v824, %v821
    %v942 = vpack.c.b16 %v828, %v825
    %v943 = vpack.c.b16 %v829, %v826
    %v944 = vpack.c.b16 %v830, %v827
    %v945 = vpack.c.b16 %v834, %v831
    %v946 = vpack.c.b16 %v835, %v832
    %v947 = vpack.c.b16 %v836, %v833
    %v948 = vpack.c.b16 %v840, %v837
    %v949 = vpack.c.b16 %v841, %v838
    %v950 = vpack.c.b16 %v842, %v839
    %v951 = vpack.c.b16 %v846, %v843
    %v952 = vpack.c.b16 %v847, %v844
    %v953 = vpack.c.b16 %v848, %v845
    %v954 = vpack.c.b16 %v852, %v849
    %v955 = vpack.c.b16 %v853, %v850
    %v956 = vpack.c.b16 %v854, %v851
    %v957 = vpack.c.b16 %v858, %v855
    %v958 = vpack.c.b16 %v859, %v856
    %v959 = vpack.c.b16 %v860, %v857
    %v960 = vpack.c.b16 %v864, %v861
    %v961 = vpack.c.b16 %v865, %v862
    %v962 = vpack.c.b16 %v866, %v863
    %1059 = vmatprep.subr.bf16.mxu0 %v868
    %1060 = vmatpush1.bf16.msra.mxu0 %v867
    %1061 = vmatprep.subr.bf16.mxu0 %v871
    %1062 = vmatpush1.bf16.msra.mxu0 %v870
    %1063 = vmatprep.subr.bf16.mxu0 %v874
    %1064 = vmatpush1.bf16.msra.mxu0 %v873
    %1065 = vmatprep.subr.bf16.mxu0 %v877
    %1066 = vmatpush1.bf16.msra.mxu0 %v876
    %1067 = vmatprep.subr.bf16.mxu0 %v880
    %1068 = vmatpush1.bf16.msra.mxu0 %v879
    %1069 = vmatprep.subr.bf16.mxu0 %v883
    %1070 = vmatpush1.bf16.msra.mxu0 %v882
    %1071 = vmatprep.subr.bf16.mxu0 %v886
    %1072 = vmatpush1.bf16.msra.mxu0 %v885
    %1073 = vmatprep.subr.bf16.mxu0 %v889
    %1074 = vmatpush1.bf16.msra.mxu0 %v888
    %1075 = vmatprep.subr.bf16.mxu0 %v892
    %1076 = vmatpush1.bf16.msra.mxu0 %v891
    %1077 = vmatprep.subr.bf16.mxu0 %v895
    %1078 = vmatpush1.bf16.msra.mxu0 %v894
    %1079 = vmatprep.subr.bf16.mxu0 %v898
    %1080 = vmatpush1.bf16.msra.mxu0 %v897
    %1081 = vmatprep.subr.bf16.mxu0 %v901
    %1082 = vmatpush1.bf16.msra.mxu0 %v900
    %1083 = vmatprep.subr.bf16.mxu0 %v904
    %1084 = vmatpush1.bf16.msra.mxu0 %v903
    %1085 = vmatprep.subr.bf16.mxu0 %v907
    %1086 = vmatpush1.bf16.msra.mxu0 %v906
    %1087 = vmatprep.subr.bf16.mxu0 %v910
    %1088 = vmatpush1.bf16.msra.mxu0 %v909
    %1089 = vmatprep.subr.bf16.mxu0 %v913
    %1090 = vmatpush1.bf16.msra.mxu0 %v912
    %1091 = vmatprep.mubr.bf16.mxu0 %v399
    %1092 = vmatmul.mubr.bf16.gmra.mrb[0].mxu0 %v398
    %v1093 = vpop.f32.mrb[0].mxu0
    %v1094 = vadd.f32 %v535, %v1093
    %v1095 = vpop.f32.mrb[0].mxu0
    %v1096 = vadd.f32 %v539, %v1095
    %v1097 = vpop.f32.mrb[0].mxu0
    %v1098 = vpop.f32.mrb[0].mxu0
    %1099 = vdwg.mxu0
    %1100 = vmatprep.subr.bf16.mxu0 %v916
    %1101 = vmatpush1.bf16.msra.mxu0 %v915
    %1102 = vmatprep.subr.bf16.mxu0 %v919
    %1103 = vmatpush1.bf16.msra.mxu0 %v918
    %1104 = vmatprep.subr.bf16.mxu0 %v922
    %1105 = vmatpush1.bf16.msra.mxu0 %v921
    %1106 = vmatprep.subr.bf16.mxu0 %v925
    %1107 = vmatpush1.bf16.msra.mxu0 %v924
    %1108 = vmatprep.subr.bf16.mxu0 %v928
    %1109 = vmatpush1.bf16.msra.mxu0 %v927
    %1110 = vmatprep.subr.bf16.mxu0 %v931
    %1111 = vmatpush1.bf16.msra.mxu0 %v930
    %1112 = vmatprep.subr.bf16.mxu0 %v934
    %1113 = vmatpush1.bf16.msra.mxu0 %v933
    %1114 = vmatprep.subr.bf16.mxu0 %v937
    %1115 = vmatpush1.bf16.msra.mxu0 %v936
    %1116 = vmatprep.subr.bf16.mxu0 %v940
    %1117 = vmatpush1.bf16.msra.mxu0 %v939
    %1118 = vmatprep.subr.bf16.mxu0 %v943
    %1119 = vmatpush1.bf16.msra.mxu0 %v942
    %1120 = vmatprep.subr.bf16.mxu0 %v946
    %1121 = vmatpush1.bf16.msra.mxu0 %v945
    %1122 = vmatprep.subr.bf16.mxu0 %v949
    %1123 = vmatpush1.bf16.msra.mxu0 %v948
    %1124 = vmatprep.subr.bf16.mxu0 %v952
    %1125 = vmatpush1.bf16.msra.mxu0 %v951
    %1126 = vmatprep.subr.bf16.mxu0 %v955
    %1127 = vmatpush1.bf16.msra.mxu0 %v954
    %1128 = vmatprep.subr.bf16.mxu0 %v958
    %1129 = vmatpush1.bf16.msra.mxu0 %v957
    %1130 = vmatprep.subr.bf16.mxu0 %v961
    %1131 = vmatpush1.bf16.msra.mxu0 %v960
    %1132 = vmatprep.mubr.bf16.mxu0 %v401
    %1133 = vmatmul.mubr.bf16.gmra.mrb[0].mxu0 %v400
    %v1134 = vpop.f32.mrb[0].mxu0
    %v1135 = vadd.f32 %v1094, %v1134
    %v1136 = vpop.f32.mrb[0].mxu0
    %v1137 = vadd.f32 %v1096, %v1136
    %v1138 = vpop.f32.mrb[0].mxu0
    %v1139 = vpop.f32.mrb[0].mxu0
    %1140 = vdwg.mxu0
    %1141 = vmatprep.subr.bf16.mxu0 0
    %1142 = vmatpush1.bf16.msra.mxu0 %v869
    %1143 = vmatprep.subr.bf16.mxu0 0
    %1144 = vmatpush1.bf16.msra.mxu0 %v872
    %1145 = vmatprep.subr.bf16.mxu0 0
    %1146 = vmatpush1.bf16.msra.mxu0 %v875
    %1147 = vmatprep.subr.bf16.mxu0 0
    %1148 = vmatpush1.bf16.msra.mxu0 %v878
    %1149 = vmatprep.subr.bf16.mxu0 0
    %1150 = vmatpush1.bf16.msra.mxu0 %v881
    %1151 = vmatprep.subr.bf16.mxu0 0
    %1152 = vmatpush1.bf16.msra.mxu0 %v884
    %1153 = vmatprep.subr.bf16.mxu0 0
    %1154 = vmatpush1.bf16.msra.mxu0 %v887
    %1155 = vmatprep.subr.bf16.mxu0 0
    %1156 = vmatpush1.bf16.msra.mxu0 %v890
    %1157 = vmatprep.subr.bf16.mxu0 0
    %1158 = vmatpush1.bf16.msra.mxu0 %v893
    %1159 = vmatprep.subr.bf16.mxu0 0
    %1160 = vmatpush1.bf16.msra.mxu0 %v896
    %1161 = vmatprep.subr.bf16.mxu0 0
    %1162 = vmatpush1.bf16.msra.mxu0 %v899
    %1163 = vmatprep.subr.bf16.mxu0 0
    %1164 = vmatpush1.bf16.msra.mxu0 %v902
    %1165 = vmatprep.subr.bf16.mxu0 0
    %1166 = vmatpush1.bf16.msra.mxu0 %v905
    %1167 = vmatprep.subr.bf16.mxu0 0
    %1168 = vmatpush1.bf16.msra.mxu0 %v908
    %1169 = vmatprep.subr.bf16.mxu0 0
    %1170 = vmatpush1.bf16.msra.mxu0 %v911
    %1171 = vmatprep.subr.bf16.mxu0 0
    %1172 = vmatpush1.bf16.msra.mxu0 %v914
    %1173 = vmatprep.mubr.bf16.mxu0 %v399
    %1174 = vmatmul.mubr.bf16.gmra.mrb[0].mxu0 %v398
    %v1175 = vpop.f32.mrb[0].mxu0
    %v1176 = vadd.f32 %v543, %v1175
    %v1177 = vpop.f32.mrb[0].mxu0
    %v1178 = vpop.f32.mrb[0].mxu0
    %v1179 = vpop.f32.mrb[0].mxu0
    %1180 = vdwg.mxu0
    %1181 = vmatprep.subr.bf16.mxu0 0
    %1182 = vmatpush1.bf16.msra.mxu0 %v917
    %1183 = vmatprep.subr.bf16.mxu0 0
    %1184 = vmatpush1.bf16.msra.mxu0 %v920
    %1185 = vmatprep.subr.bf16.mxu0 0
    %1186 = vmatpush1.bf16.msra.mxu0 %v923
    %1187 = vmatprep.subr.bf16.mxu0 0
    %1188 = vmatpush1.bf16.msra.mxu0 %v926
    %1189 = vmatprep.subr.bf16.mxu0 0
    %1190 = vmatpush1.bf16.msra.mxu0 %v929
    %1191 = vmatprep.subr.bf16.mxu0 0
    %1192 = vmatpush1.bf16.msra.mxu0 %v932
    %1193 = vmatprep.subr.bf16.mxu0 0
    %1194 = vmatpush1.bf16.msra.mxu0 %v935
    %1195 = vmatprep.subr.bf16.mxu0 0
    %1196 = vmatpush1.bf16.msra.mxu0 %v938
    %1197 = vmatprep.subr.bf16.mxu0 0
    %1198 = vmatpush1.bf16.msra.mxu0 %v941
    %1199 = vmatprep.subr.bf16.mxu0 0
    %1200 = vmatpush1.bf16.msra.mxu0 %v944
    %1201 = vmatprep.subr.bf16.mxu0 0
    %1202 = vmatpush1.bf16.msra.mxu0 %v947
    %1203 = vmatprep.subr.bf16.mxu0 0
    %1204 = vmatpush1.bf16.msra.mxu0 %v950
    %1205 = vmatprep.subr.bf16.mxu0 0
    %1206 = vmatpush1.bf16.msra.mxu0 %v953
    %1207 = vmatprep.subr.bf16.mxu0 0
    %1208 = vmatpush1.bf16.msra.mxu0 %v956
    %1209 = vmatprep.subr.bf16.mxu0 0
    %1210 = vmatpush1.bf16.msra.mxu0 %v959
    %1211 = vmatprep.subr.bf16.mxu0 0
    %1212 = vmatpush1.bf16.msra.mxu0 %v962
    %1213 = vmatprep.mubr.bf16.mxu0 %v401
    %1214 = vmatmul.mubr.bf16.gmra.mrb[0].mxu0 %v400
    %v1215 = vpop.f32.mrb[0].mxu0
    %v1216 = vadd.f32 %v1176, %v1215
    %v1217 = vpop.f32.mrb[0].mxu0
    %v1218 = vpop.f32.mrb[0].mxu0
    %v1219 = vpop.f32.mrb[0].mxu0
    %1220 = vdwg.mxu0
    %vm1221 = vcmp.gt.f32.partialorder %v1135, 0.0
    %vm1222 = vcmp.gt.f32.partialorder %v1137, 0.0
    %vm1223 = vcmp.gt.f32.partialorder %v1216, 0.0
    %v1224 = vmul.f32 %v1135, 0.2
    %v1225 = vmul.f32 %v1137, 0.2
    %v1226 = vmul.f32 %v1216, 0.2
    %v1227 = vsel %vm1221, %v1135, %v1224
    %v1228 = vsel %vm1222, %v1137, %v1225
    %v1229 = vsel %vm1223, %v1216, %v1226
    %v1230 = vpack.c.bf16 %v1227, %v1227
    %v1231 = vpack.c.bf16 %v1228, %v1228
    %v1232 = vpack.c.bf16 %v1229, %v1229
    %v1233 = vld [vmem:[#allocation6] sm:$0xff]
    %v1234 = vld [vmem:[#allocation6 + $0x8] sm:$0xff]
    %v1235 = vld [vmem:[#allocation6 + $0x10] sm:$0xff]
    %v1236 = vld [vmem:[#allocation6 + $0x18] sm:$0xff]
    %v1237 = vld [vmem:[#allocation6 + $0x20] sm:$0xff]
    %v1238 = vld [vmem:[#allocation6 + $0x28] sm:$0xff]
    %v1239 = vld [vmem:[#allocation6 + $0x30] sm:$0xff]
    %v1240 = vld [vmem:[#allocation6 + $0x38] sm:$0xff]
    %v1241 = vld [vmem:[#allocation6 + $0x40] sm:$0xff]
    %v1242 = vld [vmem:[#allocation6 + $0x48] sm:$0xff]
    %v1243 = vld [vmem:[#allocation6 + $0x50] sm:$0xff]
    %v1244 = vld [vmem:[#allocation6 + $0x58] sm:$0xff]
    %v1245 = vld [vmem:[#allocation6 + $0x60] sm:$0xff]
    %v1246 = vld [vmem:[#allocation6 + $0x68] sm:$0xff]
    %v1247 = vld [vmem:[#allocation6 + $0x70] sm:$0xff]
    %v1248 = vld [vmem:[#allocation6 + $0x78] sm:$0xff]
    %v1249 = vld [vmem:[#allocation6 + $0x80] sm:$0xff]
    %v1250 = vld [vmem:[#allocation6 + $0x88] sm:$0xff]
    %v1251 = vld [vmem:[#allocation6 + $0x90] sm:$0xff]
    %v1252 = vld [vmem:[#allocation6 + $0x98] sm:$0xff]
    %v1253 = vld [vmem:[#allocation6 + $0xa0] sm:$0xff]
    %v1254 = vld [vmem:[#allocation6 + $0xa8] sm:$0xff]
    %v1255 = vld [vmem:[#allocation6 + $0xb0] sm:$0xff]
    %v1256 = vld [vmem:[#allocation6 + $0xb8] sm:$0xff]
    %v1257 = vld [vmem:[#allocation6 + $0xc0] sm:$0xff]
    %v1258 = vld [vmem:[#allocation6 + $0xc8] sm:$0xff]
    %v1259 = vld [vmem:[#allocation6 + $0xd0] sm:$0xff]
    %v1260 = vld [vmem:[#allocation6 + $0xd8] sm:$0xff]
    %v1261 = vld [vmem:[#allocation6 + $0xe0] sm:$0xff]
    %v1262 = vld [vmem:[#allocation6 + $0xe8] sm:$0xff]
    %v1263 = vld [vmem:[#allocation6 + $0xf0] sm:$0xff]
    %v1264 = vld [vmem:[#allocation6 + $0xf8] sm:$0xff]
    %v1265 = vld [vmem:[#allocation6 + $0x100] sm:$0xff]
    %v1266 = vld [vmem:[#allocation6 + $0x108] sm:$0xff]
    %v1267 = vld [vmem:[#allocation6 + $0x110] sm:$0xff]
    %v1268 = vld [vmem:[#allocation6 + $0x118] sm:$0xff]
    %v1269 = vld [vmem:[#allocation6 + $0x120] sm:$0xff]
    %v1270 = vld [vmem:[#allocation6 + $0x128] sm:$0xff]
    %v1271 = vld [vmem:[#allocation6 + $0x130] sm:$0xff]
    %v1272 = vld [vmem:[#allocation6 + $0x138] sm:$0xff]
    %v1273 = vld [vmem:[#allocation6 + $0x140] sm:$0xff]
    %v1274 = vld [vmem:[#allocation6 + $0x148] sm:$0xff]
    %v1275 = vld [vmem:[#allocation6 + $0x150] sm:$0xff]
    %v1276 = vld [vmem:[#allocation6 + $0x158] sm:$0xff]
    %v1277 = vld [vmem:[#allocation6 + $0x160] sm:$0xff]
    %v1278 = vld [vmem:[#allocation6 + $0x168] sm:$0xff]
    %v1279 = vld [vmem:[#allocation6 + $0x170] sm:$0xff]
    %v1280 = vld [vmem:[#allocation6 + $0x178] sm:$0xff]
    %v1281 = vld [vmem:[%s6] sm:$0x3]
    %v1283 = vlaneseq
    %v1284 = vshrl.u32 %v1283, 7
    %v1285 = vsub.s32 0, %v1284
    %v1286 = vrot.slane %v1281, %v1285
    %v1287 = vlaneseq
    %v1288 = vshrl.u32 %v1287, 7
    %v1289 = vsub.s32 1, %v1288
    %v1290 = vrot.slane %v1281, %v1289
    %v1341 = vunpack.c.l.b16 %v1233
    %v1342 = vunpack.c.h.b16 %v1233
    %v1343 = vunpack.c.l.b16 %v1234
    %v1344 = vunpack.c.h.b16 %v1234
    %v1345 = vunpack.c.l.b16 %v1235
    %v1346 = vunpack.c.h.b16 %v1235
    %v1347 = vunpack.c.l.b16 %v1236
    %v1348 = vunpack.c.h.b16 %v1236
    %v1349 = vunpack.c.l.b16 %v1237
    %v1350 = vunpack.c.h.b16 %v1237
    %v1351 = vunpack.c.l.b16 %v1238
    %v1352 = vunpack.c.h.b16 %v1238
    %v1353 = vunpack.c.l.b16 %v1239
    %v1354 = vunpack.c.h.b16 %v1239
    %v1355 = vunpack.c.l.b16 %v1240
    %v1356 = vunpack.c.h.b16 %v1240
    %v1357 = vunpack.c.l.b16 %v1241
    %v1358 = vunpack.c.h.b16 %v1241
    %v1359 = vunpack.c.l.b16 %v1242
    %v1360 = vunpack.c.h.b16 %v1242
    %v1361 = vunpack.c.l.b16 %v1243
    %v1362 = vunpack.c.h.b16 %v1243
    %v1363 = vunpack.c.l.b16 %v1244
    %v1364 = vunpack.c.h.b16 %v1244
    %v1365 = vunpack.c.l.b16 %v1245
    %v1366 = vunpack.c.h.b16 %v1245
    %v1367 = vunpack.c.l.b16 %v1246
    %v1368 = vunpack.c.h.b16 %v1246
    %v1369 = vunpack.c.l.b16 %v1247
    %v1370 = vunpack.c.h.b16 %v1247
    %v1371 = vunpack.c.l.b16 %v1248
    %v1372 = vunpack.c.h.b16 %v1248
    %v1373 = vunpack.c.l.b16 %v1249
    %v1374 = vunpack.c.h.b16 %v1249
    %v1375 = vunpack.c.l.b16 %v1250
    %v1376 = vunpack.c.h.b16 %v1250
    %v1377 = vunpack.c.l.b16 %v1251
    %v1378 = vunpack.c.h.b16 %v1251
    %v1379 = vunpack.c.l.b16 %v1252
    %v1380 = vunpack.c.h.b16 %v1252
    %v1381 = vunpack.c.l.b16 %v1253
    %v1382 = vunpack.c.h.b16 %v1253
    %v1383 = vunpack.c.l.b16 %v1254
    %v1384 = vunpack.c.h.b16 %v1254
    %v1385 = vunpack.c.l.b16 %v1255
    %v1386 = vunpack.c.h.b16 %v1255
    %v1387 = vunpack.c.l.b16 %v1256
    %v1388 = vunpack.c.h.b16 %v1256
    %v1389 = vunpack.c.l.b16 %v1257
    %v1390 = vunpack.c.h.b16 %v1257
    %v1391 = vunpack.c.l.b16 %v1258
    %v1392 = vunpack.c.h.b16 %v1258
    %v1393 = vunpack.c.l.b16 %v1259
    %v1394 = vunpack.c.h.b16 %v1259
    %v1395 = vunpack.c.l.b16 %v1260
    %v1396 = vunpack.c.h.b16 %v1260
    %v1397 = vunpack.c.l.b16 %v1261
    %v1398 = vunpack.c.h.b16 %v1261
    %v1399 = vunpack.c.l.b16 %v1262
    %v1400 = vunpack.c.h.b16 %v1262
    %v1401 = vunpack.c.l.b16 %v1263
    %v1402 = vunpack.c.h.b16 %v1263
    %v1403 = vunpack.c.l.b16 %v1264
    %v1404 = vunpack.c.h.b16 %v1264
    %v1405 = vunpack.c.l.b16 %v1265
    %v1406 = vunpack.c.h.b16 %v1265
    %v1407 = vunpack.c.l.b16 %v1266
    %v1408 = vunpack.c.h.b16 %v1266
    %v1409 = vunpack.c.l.b16 %v1267
    %v1410 = vunpack.c.h.b16 %v1267
    %v1411 = vunpack.c.l.b16 %v1268
    %v1412 = vunpack.c.h.b16 %v1268
    %v1413 = vunpack.c.l.b16 %v1269
    %v1414 = vunpack.c.h.b16 %v1269
    %v1415 = vunpack.c.l.b16 %v1270
    %v1416 = vunpack.c.h.b16 %v1270
    %v1417 = vunpack.c.l.b16 %v1271
    %v1418 = vunpack.c.h.b16 %v1271
    %v1419 = vunpack.c.l.b16 %v1272
    %v1420 = vunpack.c.h.b16 %v1272
    %v1421 = vunpack.c.l.b16 %v1273
    %v1422 = vunpack.c.h.b16 %v1273
    %v1423 = vunpack.c.l.b16 %v1274
    %v1424 = vunpack.c.h.b16 %v1274
    %v1425 = vunpack.c.l.b16 %v1275
    %v1426 = vunpack.c.h.b16 %v1275
    %v1427 = vunpack.c.l.b16 %v1276
    %v1428 = vunpack.c.h.b16 %v1276
    %v1429 = vunpack.c.l.b16 %v1277
    %v1430 = vunpack.c.h.b16 %v1277
    %v1431 = vunpack.c.l.b16 %v1278
    %v1432 = vunpack.c.h.b16 %v1278
    %v1433 = vunpack.c.l.b16 %v1279
    %v1434 = vunpack.c.h.b16 %v1279
    %v1435 = vunpack.c.l.b16 %v1280
    %v1436 = vunpack.c.h.b16 %v1280
    %v1437 = vpack.c.b16 %v1343, %v1341
    %v1438 = vpack.c.b16 %v1344, %v1342
    %v1439 = vpack.c.b16 %v1347, %v1345
    %v1440 = vpack.c.b16 %v1348, %v1346
    %v1441 = vpack.c.b16 %v1351, %v1349
    %v1442 = vpack.c.b16 %v1352, %v1350
    %v1443 = vpack.c.b16 %v1355, %v1353
    %v1444 = vpack.c.b16 %v1356, %v1354
    %v1445 = vpack.c.b16 %v1359, %v1357
    %v1446 = vpack.c.b16 %v1360, %v1358
    %v1447 = vpack.c.b16 %v1363, %v1361
    %v1448 = vpack.c.b16 %v1364, %v1362
    %v1449 = vpack.c.b16 %v1367, %v1365
    %v1450 = vpack.c.b16 %v1368, %v1366
    %v1451 = vpack.c.b16 %v1371, %v1369
    %v1452 = vpack.c.b16 %v1372, %v1370
    %v1453 = vpack.c.b16 %v1375, %v1373
    %v1454 = vpack.c.b16 %v1376, %v1374
    %v1455 = vpack.c.b16 %v1379, %v1377
    %v1456 = vpack.c.b16 %v1380, %v1378
    %v1457 = vpack.c.b16 %v1383, %v1381
    %v1458 = vpack.c.b16 %v1384, %v1382
    %v1459 = vpack.c.b16 %v1387, %v1385
    %v1460 = vpack.c.b16 %v1388, %v1386
    %v1461 = vpack.c.b16 %v1391, %v1389
    %v1462 = vpack.c.b16 %v1392, %v1390
    %v1463 = vpack.c.b16 %v1395, %v1393
    %v1464 = vpack.c.b16 %v1396, %v1394
    %v1465 = vpack.c.b16 %v1399, %v1397
    %v1466 = vpack.c.b16 %v1400, %v1398
    %v1467 = vpack.c.b16 %v1403, %v1401
    %v1468 = vpack.c.b16 %v1404, %v1402
    %v1469 = vpack.c.b16 %v1407, %v1405
    %v1470 = vpack.c.b16 %v1408, %v1406
    %v1471 = vpack.c.b16 %v1411, %v1409
    %v1472 = vpack.c.b16 %v1412, %v1410
    %v1473 = vpack.c.b16 %v1415, %v1413
    %v1474 = vpack.c.b16 %v1416, %v1414
    %v1475 = vpack.c.b16 %v1419, %v1417
    %v1476 = vpack.c.b16 %v1420, %v1418
    %v1477 = vpack.c.b16 %v1423, %v1421
    %v1478 = vpack.c.b16 %v1424, %v1422
    %v1479 = vpack.c.b16 %v1427, %v1425
    %v1480 = vpack.c.b16 %v1428, %v1426
    %v1481 = vpack.c.b16 %v1431, %v1429
    %v1482 = vpack.c.b16 %v1432, %v1430
    %v1483 = vpack.c.b16 %v1435, %v1433
    %v1484 = vpack.c.b16 %v1436, %v1434
    %1533 = vmatprep.subr.bf16.mxu0 %v1438
    %1534 = vmatpush1.bf16.msra.mxu0 %v1437
    %1535 = vmatprep.subr.bf16.mxu0 %v1440
    %1536 = vmatpush1.bf16.msra.mxu0 %v1439
    %1537 = vmatprep.subr.bf16.mxu0 %v1442
    %1538 = vmatpush1.bf16.msra.mxu0 %v1441
    %1539 = vmatprep.subr.bf16.mxu0 %v1444
    %1540 = vmatpush1.bf16.msra.mxu0 %v1443
    %1541 = vmatprep.subr.bf16.mxu0 %v1446
    %1542 = vmatpush1.bf16.msra.mxu0 %v1445
    %1543 = vmatprep.subr.bf16.mxu0 %v1448
    %1544 = vmatpush1.bf16.msra.mxu0 %v1447
    %1545 = vmatprep.subr.bf16.mxu0 %v1450
    %1546 = vmatpush1.bf16.msra.mxu0 %v1449
    %1547 = vmatprep.subr.bf16.mxu0 %v1452
    %1548 = vmatpush1.bf16.msra.mxu0 %v1451
    %1549 = vmatprep.subr.bf16.mxu0 %v1454
    %1550 = vmatpush1.bf16.msra.mxu0 %v1453
    %1551 = vmatprep.subr.bf16.mxu0 %v1456
    %1552 = vmatpush1.bf16.msra.mxu0 %v1455
    %1553 = vmatprep.subr.bf16.mxu0 %v1458
    %1554 = vmatpush1.bf16.msra.mxu0 %v1457
    %1555 = vmatprep.subr.bf16.mxu0 %v1460
    %1556 = vmatpush1.bf16.msra.mxu0 %v1459
    %1557 = vmatprep.subr.bf16.mxu0 %v1462
    %1558 = vmatpush1.bf16.msra.mxu0 %v1461
    %1559 = vmatprep.subr.bf16.mxu0 %v1464
    %1560 = vmatpush1.bf16.msra.mxu0 %v1463
    %1561 = vmatprep.subr.bf16.mxu0 %v1466
    %1562 = vmatpush1.bf16.msra.mxu0 %v1465
    %1563 = vmatprep.subr.bf16.mxu0 %v1468
    %1564 = vmatpush1.bf16.msra.mxu0 %v1467
    %1565 = vmatprep.mubr.bf16.mxu0 %v1231
    %1566 = vmatmul.mubr.bf16.gmra.mrb[0].mxu0 %v1230
    %v1567 = vpop.f32.mrb[0].mxu0
    %v1568 = vadd.f32 %v1286, %v1567
    %v1569 = vpop.f32.mrb[0].mxu0
    %v1570 = vadd.f32 %v1290, %v1569
    %v1571 = vpop.f32.mrb[0].mxu0
    %v1572 = vpop.f32.mrb[0].mxu0
    %1573 = vdwg.mxu0
    %1574 = vmatprep.subr.bf16.mxu0 %v1470
    %1575 = vmatpush1.bf16.msra.mxu0 %v1469
    %1576 = vmatprep.subr.bf16.mxu0 %v1472
    %1577 = vmatpush1.bf16.msra.mxu0 %v1471
    %1578 = vmatprep.subr.bf16.mxu0 %v1474
    %1579 = vmatpush1.bf16.msra.mxu0 %v1473
    %1580 = vmatprep.subr.bf16.mxu0 %v1476
    %1581 = vmatpush1.bf16.msra.mxu0 %v1475
    %1582 = vmatprep.subr.bf16.mxu0 %v1478
    %1583 = vmatpush1.bf16.msra.mxu0 %v1477
    %1584 = vmatprep.subr.bf16.mxu0 %v1480
    %1585 = vmatpush1.bf16.msra.mxu0 %v1479
    %1586 = vmatprep.subr.bf16.mxu0 %v1482
    %1587 = vmatpush1.bf16.msra.mxu0 %v1481
    %1588 = vmatprep.subr.bf16.mxu0 %v1484
    %1589 = vmatpush1.bf16.msra.mxu0 %v1483
    %1590 = vmatprep.subr.bf16.mxu0 0
    %1591 = vmatpush1.bf16.msra.mxu0 0
    %1592 = vmatprep.subr.bf16.mxu0 0
    %1593 = vmatpush1.bf16.msra.mxu0 0
    %1594 = vmatprep.subr.bf16.mxu0 0
    %1595 = vmatpush1.bf16.msra.mxu0 0
    %1596 = vmatprep.subr.bf16.mxu0 0
    %1597 = vmatpush1.bf16.msra.mxu0 0
    %1598 = vmatprep.subr.bf16.mxu0 0
    %1599 = vmatpush1.bf16.msra.mxu0 0
    %1600 = vmatprep.subr.bf16.mxu0 0
    %1601 = vmatpush1.bf16.msra.mxu0 0
    %1602 = vmatprep.subr.bf16.mxu0 0
    %1603 = vmatpush1.bf16.msra.mxu0 0
    %1604 = vmatprep.subr.bf16.mxu0 0
    %1605 = vmatpush1.bf16.msra.mxu0 0
    %1606 = vmatprep.mubr.bf16.mxu0 0
    %1607 = vmatmul.mubr.bf16.gmra.mrb[0].mxu0 %v1232
    %v1608 = vpop.f32.mrb[0].mxu0
    %v1609 = vadd.f32 %v1568, %v1608
    %v1610 = vpop.f32.mrb[0].mxu0
    %v1611 = vadd.f32 %v1570, %v1610
    %v1612 = vpop.f32.mrb[0].mxu0
    %v1613 = vpop.f32.mrb[0].mxu0
    %1614 = vdwg.mxu0
    %vm1615 = vcmp.gt.f32.partialorder %v1609, 0.0
    %vm1616 = vcmp.gt.f32.partialorder %v1611, 0.0
    %v1617 = vmul.f32 %v1609, 0.2
    %v1618 = vmul.f32 %v1611, 0.2
    %v1619 = vsel %vm1615, %v1609, %v1617
    %v1620 = vsel %vm1616, %v1611, %v1618
    %v1621 = vpack.c.bf16 %v1619, %v1619
    %v1622 = vpack.c.bf16 %v1620, %v1620
    %v1623 = vld [vmem:[#allocation7] sm:$0xf]
    %v1624 = vld [vmem:[#allocation7 + $0x4] sm:$0xf]
    %v1625 = vld [vmem:[#allocation7 + $0x8] sm:$0xf]
    %v1626 = vld [vmem:[#allocation7 + $0xc] sm:$0xf]
    %v1627 = vld [vmem:[#allocation7 + $0x10] sm:$0xf]
    %v1628 = vld [vmem:[#allocation7 + $0x14] sm:$0xf]
    %v1629 = vld [vmem:[#allocation7 + $0x18] sm:$0xf]
    %v1630 = vld [vmem:[#allocation7 + $0x1c] sm:$0xf]
    %v1631 = vld [vmem:[#allocation7 + $0x20] sm:$0xf]
    %v1632 = vld [vmem:[#allocation7 + $0x24] sm:$0xf]
    %v1633 = vld [vmem:[#allocation7 + $0x28] sm:$0xf]
    %v1634 = vld [vmem:[#allocation7 + $0x2c] sm:$0xf]
    %v1635 = vld [vmem:[#allocation7 + $0x30] sm:$0xf]
    %v1636 = vld [vmem:[#allocation7 + $0x34] sm:$0xf]
    %v1637 = vld [vmem:[#allocation7 + $0x38] sm:$0xf]
    %v1638 = vld [vmem:[#allocation7 + $0x3c] sm:$0xf]
    %v1639 = vld [vmem:[#allocation7 + $0x40] sm:$0xf]
    %v1640 = vld [vmem:[#allocation7 + $0x44] sm:$0xf]
    %v1641 = vld [vmem:[#allocation7 + $0x48] sm:$0xf]
    %v1642 = vld [vmem:[#allocation7 + $0x4c] sm:$0xf]
    %v1643 = vld [vmem:[#allocation7 + $0x50] sm:$0xf]
    %v1644 = vld [vmem:[#allocation7 + $0x54] sm:$0xf]
    %v1645 = vld [vmem:[#allocation7 + $0x58] sm:$0xf]
    %v1646 = vld [vmem:[#allocation7 + $0x5c] sm:$0xf]
    %v1647 = vld [vmem:[#allocation7 + $0x60] sm:$0xf]
    %v1648 = vld [vmem:[#allocation7 + $0x64] sm:$0xf]
    %v1649 = vld [vmem:[#allocation7 + $0x68] sm:$0xf]
    %v1650 = vld [vmem:[#allocation7 + $0x6c] sm:$0xf]
    %v1651 = vld [vmem:[#allocation7 + $0x70] sm:$0xf]
    %v1652 = vld [vmem:[#allocation7 + $0x74] sm:$0xf]
    %v1653 = vld [vmem:[#allocation7 + $0x78] sm:$0xf]
    %v1654 = vld [vmem:[#allocation7 + $0x7c] sm:$0xf]
    %v1655 = vld [vmem:[%s8] sm:$0x1]
    %v1657 = vlaneseq
    %v1658 = vshrl.u32 %v1657, 7
    %v1659 = vsub.s32 0, %v1658
    %v1660 = vrot.slane %v1655, %v1659
    %v1694 = vunpack.c.l.b16 %v1623
    %v1695 = vunpack.c.l.b16 %v1624
    %v1696 = vunpack.c.l.b16 %v1625
    %v1697 = vunpack.c.l.b16 %v1626
    %v1698 = vunpack.c.l.b16 %v1627
    %v1699 = vunpack.c.l.b16 %v1628
    %v1700 = vunpack.c.l.b16 %v1629
    %v1701 = vunpack.c.l.b16 %v1630
    %v1702 = vunpack.c.l.b16 %v1631
    %v1703 = vunpack.c.l.b16 %v1632
    %v1704 = vunpack.c.l.b16 %v1633
    %v1705 = vunpack.c.l.b16 %v1634
    %v1706 = vunpack.c.l.b16 %v1635
    %v1707 = vunpack.c.l.b16 %v1636
    %v1708 = vunpack.c.l.b16 %v1637
    %v1709 = vunpack.c.l.b16 %v1638
    %v1710 = vunpack.c.l.b16 %v1639
    %v1711 = vunpack.c.l.b16 %v1640
    %v1712 = vunpack.c.l.b16 %v1641
    %v1713 = vunpack.c.l.b16 %v1642
    %v1714 = vunpack.c.l.b16 %v1643
    %v1715 = vunpack.c.l.b16 %v1644
    %v1716 = vunpack.c.l.b16 %v1645
    %v1717 = vunpack.c.l.b16 %v1646
    %v1718 = vunpack.c.l.b16 %v1647
    %v1719 = vunpack.c.l.b16 %v1648
    %v1720 = vunpack.c.l.b16 %v1649
    %v1721 = vunpack.c.l.b16 %v1650
    %v1722 = vunpack.c.l.b16 %v1651
    %v1723 = vunpack.c.l.b16 %v1652
    %v1724 = vunpack.c.l.b16 %v1653
    %v1725 = vunpack.c.l.b16 %v1654
    %v1726 = vpack.c.b16 %v1695, %v1694
    %v1727 = vpack.c.b16 %v1697, %v1696
    %v1728 = vpack.c.b16 %v1699, %v1698
    %v1729 = vpack.c.b16 %v1701, %v1700
    %v1730 = vpack.c.b16 %v1703, %v1702
    %v1731 = vpack.c.b16 %v1705, %v1704
    %v1732 = vpack.c.b16 %v1707, %v1706
    %v1733 = vpack.c.b16 %v1709, %v1708
    %v1734 = vpack.c.b16 %v1711, %v1710
    %v1735 = vpack.c.b16 %v1713, %v1712
    %v1736 = vpack.c.b16 %v1715, %v1714
    %v1737 = vpack.c.b16 %v1717, %v1716
    %v1738 = vpack.c.b16 %v1719, %v1718
    %v1739 = vpack.c.b16 %v1721, %v1720
    %v1740 = vpack.c.b16 %v1723, %v1722
    %v1741 = vpack.c.b16 %v1725, %v1724
    %1758 = vmatprep.subr.bf16.mxu0 0
    %1759 = vmatpush1.bf16.msra.mxu0 %v1726
    %1760 = vmatprep.subr.bf16.mxu0 0
    %1761 = vmatpush1.bf16.msra.mxu0 %v1727
    %1762 = vmatprep.subr.bf16.mxu0 0
    %1763 = vmatpush1.bf16.msra.mxu0 %v1728
    %1764 = vmatprep.subr.bf16.mxu0 0
    %1765 = vmatpush1.bf16.msra.mxu0 %v1729
    %1766 = vmatprep.subr.bf16.mxu0 0
    %1767 = vmatpush1.bf16.msra.mxu0 %v1730
    %1768 = vmatprep.subr.bf16.mxu0 0
    %1769 = vmatpush1.bf16.msra.mxu0 %v1731
    %1770 = vmatprep.subr.bf16.mxu0 0
    %1771 = vmatpush1.bf16.msra.mxu0 %v1732
    %1772 = vmatprep.subr.bf16.mxu0 0
    %1773 = vmatpush1.bf16.msra.mxu0 %v1733
    %1774 = vmatprep.subr.bf16.mxu0 0
    %1775 = vmatpush1.bf16.msra.mxu0 %v1734
    %1776 = vmatprep.subr.bf16.mxu0 0
    %1777 = vmatpush1.bf16.msra.mxu0 %v1735
    %1778 = vmatprep.subr.bf16.mxu0 0
    %1779 = vmatpush1.bf16.msra.mxu0 %v1736
    %1780 = vmatprep.subr.bf16.mxu0 0
    %1781 = vmatpush1.bf16.msra.mxu0 %v1737
    %1782 = vmatprep.subr.bf16.mxu0 0
    %1783 = vmatpush1.bf16.msra.mxu0 %v1738
    %1784 = vmatprep.subr.bf16.mxu0 0
    %1785 = vmatpush1.bf16.msra.mxu0 %v1739
    %1786 = vmatprep.subr.bf16.mxu0 0
    %1787 = vmatpush1.bf16.msra.mxu0 %v1740
    %1788 = vmatprep.subr.bf16.mxu0 0
    %1789 = vmatpush1.bf16.msra.mxu0 %v1741
    %1790 = vmatprep.mubr.bf16.mxu0 %v1622
    %1791 = vmatmul.mubr.bf16.gmra.mrb[0].mxu0 %v1621
    %v1792 = vpop.f32.mrb[0].mxu0
    %v1793 = vadd.f32 %v1660, %v1792
    %v1794 = vpop.f32.mrb[0].mxu0
    %v1795 = vpop.f32.mrb[0].mxu0
    %v1796 = vpop.f32.mrb[0].mxu0
    %1797 = vdwg.mxu0
    %v1798 = vsub.f32 0.0, %v1793
    %v1799 = vmul.f32 %v1798, 1.442695
    %v1800 = vpow.pop %v1799
    %v1801 = vadd.f32 %v1800, 1.0
    %v1802 = vrcp.pop %v1801
    %1803 = vst [vmem:[%s9] sm:$0xff] %v1802
    // Predicated region
    $region54: #{discriminator2_forward.1} parent=1 // pred_check
      _
    $region55: #{discriminator2_forward.1} parent=1 // pred_check_branch
      %1805 = sbr.rel (0) target = $region57
    $region56: #{discriminator2_forward.1} parent=1 // pred_region
      _
    $region57: #{discriminator2_forward.1} parent=1 // pred_fallthru
      _
    // Predicated region
    $region58: #{discriminator2_forward.1} parent=1 // pred_check
      _
    $region59: #{discriminator2_forward.1} parent=1 // pred_check_branch
      %1807 = sbr.rel (0) target = $region61
    $region60: #{discriminator2_forward.1} parent=1 // pred_region
      _
    $region61: #{discriminator2_forward.1} parent=1 // pred_fallthru
      _
    %1808 = vsyncpa [#allocation3], 1
    %1809 = vsyncpa [#allocation5], 1
    %1810 = vsyncpa [#allocation8], 1

</llo_original>
